<compile_context>
chip_gen: v7x
topology: tpu7x:2x2x1
jax: 0.10.0
libtpu: 0.0.40
codegen_flags: <defaults>
</compile_context>

<pallas_src>
import functools

import jax
import jax.numpy as jnp
from jax.experimental import pallas as pl
from jax.experimental.pallas import tpu as pltpu


# -----------------------------------------------------------------------------
# pltpu.roll direction probe (one-time).  The kernel only needs
# "result[p] = x[p-1]" / "result[p] = x[p+1]" with the wrapped row masked, so a
# tiny probe makes it robust to either rotate convention; if pltpu.roll is
# unavailable we fall back to jnp.roll (correct, just slower - slice+concat
# instead of an XLU rotate).
# -----------------------------------------------------------------------------
_ROLL_MODE = None  # "xlu_fwd" | "xlu_bwd" | "jnp"


def _roll_probe_kernel(x_ref, o_ref):
    o_ref[...] = pltpu.roll(x_ref[...], shift=1, axis=0)


def _detect_roll_mode():
    global _ROLL_MODE
    if _ROLL_MODE is not None:
        return _ROLL_MODE
    try:
        x = (jnp.arange(8, dtype=jnp.float32)[:, None]
             * jnp.ones((1, 128), jnp.float32))            # x[i, :] == i
        y = pl.pallas_call(
            _roll_probe_kernel,
            out_shape=jax.ShapeDtypeStruct((8, 128), jnp.float32))(x)
        y10 = float(jax.block_until_ready(y)[1, 0])
        if abs(y10 - 0.0) < 0.5:
            _ROLL_MODE = "xlu_fwd"       # roll(+1)[p] == x[p-1]  (jnp.roll-like)
        elif abs(y10 - 2.0) < 0.5:
            _ROLL_MODE = "xlu_bwd"       # roll(+1)[p] == x[p+1]
        else:
            _ROLL_MODE = "jnp"
    except Exception:
        _ROLL_MODE = "jnp"
    return _ROLL_MODE


def _shift_prev(arr, m):
    """result[p] = arr[p-1]; row 0 is wrapped garbage and is masked by caller."""
    if _ROLL_MODE == "xlu_fwd":
        return pltpu.roll(arr, shift=1, axis=0)
    if _ROLL_MODE == "xlu_bwd":
        return pltpu.roll(arr, shift=m - 1, axis=0)
    return jnp.roll(arr, 1, axis=0)


def _shift_next(arr, m):
    """result[p] = arr[p+1]; row m-1 is wrapped garbage and is masked by caller."""
    if _ROLL_MODE == "xlu_fwd":
        return pltpu.roll(arr, shift=m - 1, axis=0)
    if _ROLL_MODE == "xlu_bwd":
        return pltpu.roll(arr, shift=1, axis=0)
    return jnp.roll(arr, -1, axis=0)


# -----------------------------------------------------------------------------
# Kernel
# -----------------------------------------------------------------------------
def _dwconv_block_kernel(apply_act, x_ref, top_ref, bot_ref, w_dw_ref,
                         w_pw_ref, b_pw_ref, o_ref, xp_ref):
    """One (batch-block, H-tile) grid step.

    x_ref  : (NB, TH, W, Cin)     input tile
    top_ref: (NB, 1, W, Cin)      row just above the tile (valid iff h > 0)
    bot_ref: (NB, 1, W, Cin)      row just below the tile (valid iff h < n_h-1)
    w_dw   : (9, Cin)             depthwise taps, row-major (ky*3 + kx)
    w_pw   : (Cin, Cout_p)        1x1 weights with BN scale folded in
    b_pw   : (1, Cout_p)          1x1 bias with BN shift folded in
    o_ref  : (NB, TH, W, Cout_p)  lane-dense output tile
    xp_ref : (NB, TH+2, W, Cin)   scratch, SAME padding along H only
    """
    nb, th, w, cin = x_ref.shape
    cout_p = o_ref.shape[3]
    h = pl.program_id(1)
    n_h = pl.num_programs(1)
    cdt = xp_ref.dtype

    # Rows [1, TH] <- tile.  The row axis is a major (non-layout) axis, so this
    # store and the window reads below are aligned (no relayout).
    xp_ref[:, 1:th + 1, :, :] = x_ref[...].astype(cdt)

    # Border rows: halo row when it exists, otherwise SAME-padding zeros.
    @pl.when(h > 0)
    def _():
        xp_ref[:, 0:1, :, :] = top_ref[...].astype(cdt)

    @pl.when(h == 0)
    def _():
        xp_ref[:, 0:1, :, :] = jnp.zeros((nb, 1, w, cin), cdt)

    @pl.when(h < n_h - 1)
    def _():
        xp_ref[:, th + 1:th + 2, :, :] = bot_ref[...].astype(cdt)

    @pl.when(h == n_h - 1)
    def _():
        xp_ref[:, th + 1:th + 2, :, :] = jnp.zeros((nb, 1, w, cin), cdt)

    # Depthwise 3x3 (VPU), taps grouped by column offset kx so the column
    # handling below needs only two shifts.
    wd = w_dw_ref[...].astype(cdt)                       # (9, Cin)
    r0 = xp_ref[:, 0:th, :, :]                           # input[y-1]
    r1 = xp_ref[:, 1:th + 1, :, :]                       # input[y]
    r2 = xp_ref[:, 2:th + 2, :, :]                       # input[y+1]
    m = nb * th * w
    s0 = (r0 * wd[0] + r1 * wd[3] + r2 * wd[6]).reshape(m, cin)   # kx = -1
    s1 = (r0 * wd[1] + r1 * wd[4] + r2 * wd[7]).reshape(m, cin)   # kx =  0
    s2 = (r0 * wd[2] + r1 * wd[5] + r2 * wd[8]).reshape(m, cin)   # kx = +1

    # out[., x] = s1[., x] + s0[., x-1] + s2[., x+1]  (zeros outside [0, W)).
    # Shifts are done on the flattened (M, Cin) view; every wrapped row lands
    # on an x == 0 / x == W-1 position and is masked to zero.
    col = jax.lax.broadcasted_iota(
        jnp.int32, (nb, th, w, cin), 2).reshape(m, cin)
    zero = jnp.zeros((), cdt)
    left = jnp.where(col == 0, zero, _shift_prev(s0, m))
    right = jnp.where(col == w - 1, zero, _shift_next(s2, m))
    acc = s1 + left + right                              # depthwise out, (M, Cin)

    # Pointwise 1x1 with folded BN/bias on the MXU (f32 accumulation).
    y = jnp.dot(acc.astype(w_pw_ref.dtype), w_pw_ref[...],
                preferred_element_type=jnp.float32)
    y = y + b_pw_ref[...]
    if apply_act:                                        # conv_bn_act_pattern
        y = y * jax.nn.sigmoid(y)
    o_ref[...] = y.reshape(nb, th, w, cout_p).astype(o_ref.dtype)


# -----------------------------------------------------------------------------
# Tile / VMEM budgeting
# -----------------------------------------------------------------------------
def _divisors(n):
    return [d for d in range(1, n + 1) if n % d == 0]


def _vmem_budget_and_limit():
    cap = 64 << 20                        # conservative default (v7x per-core)
    try:
        info = pltpu.get_tpu_info()
        cap = int(getattr(info, "vmem_capacity_bytes", cap)) or cap
    except Exception:
        pass
    budget = min(cap // 2, 56 << 20)      # per-step working-set target
    limit = min((cap * 3) // 4, budget + (32 << 20))
    return budget, limit


def _step_vmem_bytes(nb, th, W, cin, cout_p, in_isz, out_isz, cmp_isz, mm_isz):
    """Per-grid-step VMEM: double-buffered blocks, resident weights, the
    row-padded scratch and the compiler-managed value temporaries."""
    tile_in = nb * th * W * cin
    halo_in = 2 * nb * W * cin
    tile_out = nb * th * W * cout_p
    blocks = 2 * ((tile_in + halo_in) * in_isz + tile_out * out_isz)
    weights = 2 * (9 * cin * 4 + cin * cout_p * mm_isz + cout_p * 4)
    scratch = nb * (th + 2) * W * cin * cmp_isz
    temps = 7 * tile_in * cmp_isz + tile_in * mm_isz + 2 * tile_out * 4
    return blocks + weights + scratch + temps


def _choose_tiles(N, H, W, cin, cout_p, in_isz, out_isz, cmp_isz, mm_isz,
                  budget):
    """Pick (batch-fold NB, row-tile TH): fill the MXU M dimension (>=256 rows,
    folding batch images for small maps) first, then keep >=4 parallel grid
    steps when possible (megacore / 2-TC balance), then maximize the per-step
    tile within the VMEM budget."""
    best, best_key = (1, 1), None
    for nb in _divisors(N):
        for th in _divisors(H):
            if _step_vmem_bytes(nb, th, W, cin, cout_p, in_isz, out_isz,
                                cmp_isz, mm_isz) > budget:
                continue
            steps = (N // nb) * (H // th)
            m = nb * th * W
            key = (m >= 256, steps >= 4, m, th)
            if best_key is None or key > best_key:
                best, best_key = (nb, th), key
    return best


# -----------------------------------------------------------------------------
# Wrappers
# -----------------------------------------------------------------------------
def depthwise_conv_block_nhwc(x_nhwc, dw_w_hwc, pw_w_ic, pw_b, gamma, beta,
                              running_mean, running_var, eps=1e-3, *,
                              tile_h=None, tile_n=None,
                              matmul_dtype=jnp.bfloat16,
                              compute_dtype=jnp.float32,
                              out_dtype=jnp.float32,
                              apply_act=False):
    """x_nhwc: (N, H, W, Cin) -> (N, H, W, Cout).  Eval-mode BN folded in.

    matmul_dtype : MXU operand dtype of the 1x1 (bf16 is a win on v5e/v6e/v7x;
                   pass jnp.float32 for exact f32 parity).
    compute_dtype: depthwise accumulation dtype (keep f32 on v5e; bf16 is an
                   option on v6e/v7x which have bf16 VALU).
    """
    N, H, W, Cin = x_nhwc.shape
    Cout = pw_w_ic.shape[1]
    Cout_p = ((Cout + 127) // 128) * 128          # lane-dense output / MXU N

    _detect_roll_mode()

    # Fold eval-mode BN and the pointwise bias into the 1x1 conv.
    scale = (gamma.astype(jnp.float32) *
             jax.lax.rsqrt(running_var.astype(jnp.float32) + eps))   # (Cout,)
    w_pw = (pw_w_ic.astype(jnp.float32) * scale[None, :]).astype(matmul_dtype)
    b_pw = ((pw_b - running_mean) * scale + beta).astype(jnp.float32)
    w_pw = jnp.pad(w_pw, ((0, 0), (0, Cout_p - Cout)))   # padded lanes -> 0
    b_pw = jnp.pad(b_pw, (0, Cout_p - Cout)).reshape(1, Cout_p)

    w_dw = dw_w_hwc.reshape(9, Cin).astype(compute_dtype)  # (ky*3 + kx, Cin)

    budget, vmem_limit = _vmem_budget_and_limit()
    auto_nb, auto_th = _choose_tiles(
        N, H, W, Cin, Cout_p, x_nhwc.dtype.itemsize,
        jnp.dtype(out_dtype).itemsize, jnp.dtype(compute_dtype).itemsize,
        jnp.dtype(matmul_dtype).itemsize, budget)
    nb = auto_nb if tile_n is None else tile_n
    th = auto_th if tile_h is None else tile_h
    assert N % nb == 0 and H % th == 0, (nb, th, N, H)
    grid = (N // nb, H // th)

    cost = pl.CostEstimate(
        flops=2 * N * H * W * Cin * (9 + Cout_p),
        transcendentals=(N * H * W * Cout_p) if apply_act else 0,
        bytes_accessed=int(
            N * H * W * Cin * x_nhwc.dtype.itemsize
            + N * H * W * Cout_p * jnp.dtype(out_dtype).itemsize
            + w_dw.size * w_dw.dtype.itemsize
            + w_pw.size * w_pw.dtype.itemsize + b_pw.size * 4))

    out = pl.pallas_call(
        functools.partial(_dwconv_block_kernel, apply_act),
        out_shape=jax.ShapeDtypeStruct((N, H, W, Cout_p), out_dtype),
        grid_spec=pltpu.PrefetchScalarGridSpec(
            num_scalar_prefetch=0,
            grid=grid,
            in_specs=[
                # main tile + two single-row halo blocks on the same array
                pl.BlockSpec((nb, th, W, Cin), lambda n, h: (n, h, 0, 0)),
                pl.BlockSpec((nb, 1, W, Cin),
                             lambda n, h: (n, jnp.maximum(h * th - 1, 0),
                                           0, 0)),
                pl.BlockSpec((nb, 1, W, Cin),
                             lambda n, h: (n, jnp.minimum((h + 1) * th, H - 1),
                                           0, 0)),
                pl.BlockSpec((9, Cin), lambda n, h: (0, 0)),
                pl.BlockSpec((Cin, Cout_p), lambda n, h: (0, 0)),
                pl.BlockSpec((1, Cout_p), lambda n, h: (0, 0)),
            ],
            out_specs=pl.BlockSpec((nb, th, W, Cout_p),
                                   lambda n, h: (n, h, 0, 0)),
            scratch_shapes=[pltpu.VMEM((nb, th + 2, W, Cin), compute_dtype)],
        ),
        compiler_params=pltpu.CompilerParams(
            dimension_semantics=("parallel", "parallel"),
            vmem_limit_bytes=int(vmem_limit)),
        cost_estimate=cost,
    )(x_nhwc, x_nhwc, x_nhwc, w_dw, w_pw, b_pw)

    if Cout_p != Cout:
        out = out[..., :Cout]
    return out


def depthwise_conv_block_nchw(x_nchw, *args, **kwargs):
    """PyTorch-layout (NCHW) convenience wrapper around the NHWC kernel."""
    x = jnp.transpose(x_nchw, (0, 2, 3, 1))
    y = depthwise_conv_block_nhwc(x, *args, **kwargs)
    return jnp.transpose(y, (0, 3, 1, 2))


# -----------------------------------------------------------------------------
# Pure-JAX reference (mirrors the PyTorch module, NCHW, eval-mode BN)
# -----------------------------------------------------------------------------
def _reference_forward(x_nchw, dw_w_oihw, pw_w_oihw, pw_b, gamma, beta,
                       running_mean, running_var, eps):
    cin = x_nchw.shape[1]
    xp = jnp.pad(x_nchw, ((0, 0), (0, 0), (1, 1), (1, 1)))
    y = jax.lax.conv_general_dilated(
        xp, dw_w_oihw, window_strides=(1, 1), padding="VALID",
        dimension_numbers=("NCHW", "OIHW", "NCHW"),
        feature_group_count=cin)
    y = jax.lax.conv_general_dilated(
        y, pw_w_oihw, window_strides=(1, 1), padding="VALID",
        dimension_numbers=("NCHW", "OIHW", "NCHW"))
    y = y + pw_b[None, :, None, None]
    inv = 1.0 / jnp.sqrt(running_var + eps)
    y = (y - running_mean[None, :, None, None]) * inv[None, :, None, None]
    y = y * gamma[None, :, None, None] + beta[None, :, None, None]
    return y


if __name__ == "__main__":
    key = jax.random.PRNGKey(0)
    k_x, k_dw, k_pw, k_b, k_g, k_be, k_m, k_v = jax.random.split(key, 8)

    N, Cin, Cout, H, W = 2, 4, 8, 16, 16
    eps = 1e-3  # norm_cfg eps

    x = jax.random.normal(k_x, (N, Cin, H, W), jnp.float32)

    # PyTorch parameter shapes:
    #   depthwise_conv.weight : (Cin, 1, 3, 3), no bias
    #   pointwise_conv.weight : (Cout, Cin, 1, 1), bias (Cout,)
    dw_w_oihw = 0.1 * jax.random.normal(k_dw, (Cin, 1, 3, 3), jnp.float32)
    pw_w_oihw = 0.1 * jax.random.normal(k_pw, (Cout, Cin, 1, 1), jnp.float32)
    pw_b = 0.1 * jax.random.normal(k_b, (Cout,), jnp.float32)
    gamma = 1.0 + 0.1 * jax.random.normal(k_g, (Cout,), jnp.float32)
    beta = 0.1 * jax.random.normal(k_be, (Cout,), jnp.float32)
    running_mean = 0.1 * jax.random.normal(k_m, (Cout,), jnp.float32)
    running_var = 0.5 + jnp.abs(jax.random.normal(k_v, (Cout,), jnp.float32))

    # Kernel-friendly weight layouts.
    dw_w_hwc = jnp.transpose(dw_w_oihw[:, 0, :, :], (1, 2, 0))   # (3, 3, Cin)
    pw_w_ic = jnp.transpose(pw_w_oihw[:, :, 0, 0], (1, 0))       # (Cin, Cout)

    ref = _reference_forward(x, dw_w_oihw, pw_w_oihw, pw_b, gamma, beta,
                             running_mean, running_var, eps)
    ref = jax.block_until_ready(ref)

    # 1) f32 exact-parity run, H-tiled (grid (2, 2)) -> exercises both halo
    #    branches and the column-shift path.
    out_f32 = depthwise_conv_block_nchw(
        x, dw_w_hwc, pw_w_ic, pw_b, gamma, beta, running_mean, running_var,
        eps, tile_h=8, tile_n=1, matmul_dtype=jnp.float32)
    out_f32 = jax.block_until_ready(out_f32)
    assert out_f32.shape == (N, Cout, H, W)
    assert jnp.allclose(out_f32, ref, atol=1e-4, rtol=1e-4), (
        float(jnp.max(jnp.abs(out_f32 - ref))))

    # 2) f32 run with batch folding AND H tiling (NB=2 blocks with halos).
    out_f32b = depthwise_conv_block_nchw(
        x, dw_w_hwc, pw_w_ic, pw_b, gamma, beta, running_mean, running_var,
        eps, tile_h=8, tile_n=2, matmul_dtype=jnp.float32)
    out_f32b = jax.block_until_ready(out_f32b)
    assert jnp.allclose(out_f32b, ref, atol=1e-4, rtol=1e-4), (
        float(jnp.max(jnp.abs(out_f32b - ref))))

    # 3) Default config: auto tiling (folds the whole small map into one
    #    block) and bf16 MXU operands -> looser tolerance.
    out_bf16 = depthwise_conv_block_nchw(
        x, dw_w_hwc, pw_w_ic, pw_b, gamma, beta, running_mean, running_var,
        eps)
    out_bf16 = jax.block_until_ready(out_bf16)
    assert out_bf16.shape == (N, Cout, H, W)
    assert jnp.allclose(out_bf16, ref, atol=3e-2, rtol=3e-2), (
        float(jnp.max(jnp.abs(out_bf16 - ref))))

    print("KERNEL_OK")
</pallas_src>

<mosaic_0001>
module attributes {stable_mosaic.version = 11 : i64} {
  func.func @_roll_probe_kernel(%arg0: memref<8x128xf32, #tpu.memory_space<vmem>>, %arg1: memref<8x128xf32, #tpu.memory_space<vmem>>) attributes {dimension_semantics = [], scalar_prefetch = 0 : i64, scratch_operands = 0 : i64, tpu.core_type = #tpu.core_type<tc>} {
    %c0 = arith.constant 0 : index
    %c0_0 = arith.constant 0 : index
    %0 = vector.load %arg0[%c0, %c0_0] : memref<8x128xf32, #tpu.memory_space<vmem>>, vector<8x128xf32>
    %c1_i32 = arith.constant 1 : i32
    %1 = tpu.dynamic_rotate %0 by %c1_i32 dim 0 : vector<8x128xf32>, i32 -> vector<8x128xf32>
    %c0_1 = arith.constant 0 : index
    %c0_2 = arith.constant 0 : index
    %2 = vector.load %arg1[%c0_1, %c0_2] : memref<8x128xf32, #tpu.memory_space<vmem>>, vector<8x128xf32>
    tpu.vector_store %arg1[%c0_1, %c0_2], %1 {strides = array<i32>} : memref<8x128xf32, #tpu.memory_space<vmem>>, vector<8x128xf32>,
    return
  }
}

module attributes {stable_mosaic.version = 11 : i64} {
  func.func @_dwconv_block_kernel(%arg0: i32, %arg1: i32, %arg2: memref<1x8x16x4xf32, #tpu.memory_space<vmem>>, %arg3: memref<1x1x16x4xf32, #tpu.memory_space<vmem>>, %arg4: memref<1x1x16x4xf32, #tpu.memory_space<vmem>>, %arg5: memref<9x4xf32, #tpu.memory_space<vmem>>, %arg6: memref<4x128xf32, #tpu.memory_space<vmem>>, %arg7: memref<1x128xf32, #tpu.memory_space<vmem>>, %arg8: memref<1x8x16x128xf32, #tpu.memory_space<vmem>>, %arg9: memref<1x10x16x4xf32, #tpu.memory_space<vmem>>) attributes {dimension_semantics = [#tpu.dimension_semantics<parallel>, #tpu.dimension_semantics<parallel>], iteration_bounds = array<i64: 2, 2>, scalar_prefetch = 0 : i64, scratch_operands = 1 : i64, tpu.core_type = #tpu.core_type<tc>, window_params = [{transform_indices = @transform_0, window_bounds = array<i64: 1, 8, 16, 4>}, {transform_indices = @transform_1, window_bounds = array<i64: 1, 1, 16, 4>}, {transform_indices = @transform_2, window_bounds = array<i64: 1, 1, 16, 4>}, {pipeline_mode = #tpu.pipeline_mode<synchronous>, transform_indices = @transform_3, window_bounds = array<i64: 9, 4>}, {pipeline_mode = #tpu.pipeline_mode<synchronous>, transform_indices = @transform_4, window_bounds = array<i64: 4, 128>}, {pipeline_mode = #tpu.pipeline_mode<synchronous>, transform_indices = @transform_5, window_bounds = array<i64: 1, 128>}, {transform_indices = @transform_6, window_bounds = array<i64: 1, 8, 16, 128>}]} {
    %c0 = arith.constant 0 : index
    %c0_0 = arith.constant 0 : index
    %c0_1 = arith.constant 0 : index
    %c0_2 = arith.constant 0 : index
    %0 = vector.load %arg2[%c0, %c0_0, %c0_1, %c0_2] : memref<1x8x16x4xf32, #tpu.memory_space<vmem>>, vector<1x8x16x4xf32>
    %c0_3 = arith.constant 0 : index
    %c1 = arith.constant 1 : index
    %c0_4 = arith.constant 0 : index
    %c0_5 = arith.constant 0 : index
    %1 = vector.load %arg9[%c0_3, %c1, %c0_4, %c0_5] : memref<1x10x16x4xf32, #tpu.memory_space<vmem>>, vector<1x8x16x4xf32>
    tpu.vector_store %arg9[%c0_3, %c1, %c0_4, %c0_5], %0 {strides = array<i32>} : memref<1x10x16x4xf32, #tpu.memory_space<vmem>>, vector<1x8x16x4xf32>,
    %c0_i32 = arith.constant 0 : i32
    %2 = arith.cmpi sgt, %arg1, %c0_i32 : i32
    %3 = arith.extui %2 : i1 to i32
    %c0_i32_6 = arith.constant 0 : i32
    %4 = arith.cmpi ne, %3, %c0_i32_6 : i32
    scf.if %4 {
      %c0_36 = arith.constant 0 : index
      %c0_37 = arith.constant 0 : index
      %c0_38 = arith.constant 0 : index
      %c0_39 = arith.constant 0 : index
      %97 = vector.load %arg3[%c0_36, %c0_37, %c0_38, %c0_39] : memref<1x1x16x4xf32, #tpu.memory_space<vmem>>, vector<1x1x16x4xf32>
      %c0_40 = arith.constant 0 : index
      %c0_41 = arith.constant 0 : index
      %c0_42 = arith.constant 0 : index
      %c0_43 = arith.constant 0 : index
      %98 = vector.load %arg9[%c0_40, %c0_41, %c0_42, %c0_43] : memref<1x10x16x4xf32, #tpu.memory_space<vmem>>, vector<1x1x16x4xf32>
      tpu.vector_store %arg9[%c0_40, %c0_41, %c0_42, %c0_43], %97 {strides = array<i32>} : memref<1x10x16x4xf32, #tpu.memory_space<vmem>>, vector<1x1x16x4xf32>,
    } else {
    }
    %c0_i32_7 = arith.constant 0 : i32
    %5 = arith.cmpi eq, %arg1, %c0_i32_7 : i32
    %6 = arith.extui %5 : i1 to i32
    %c0_i32_8 = arith.constant 0 : i32
    %7 = arith.cmpi ne, %6, %c0_i32_8 : i32
    scf.if %7 {
      %cst_36 = arith.constant 0.000000e+00 : f32
      %97 = vector.broadcast %cst_36 : f32 to vector<1x1x16x4xf32>
      %c0_37 = arith.constant 0 : index
      %c0_38 = arith.constant 0 : index
      %c0_39 = arith.constant 0 : index
      %c0_40 = arith.constant 0 : index
      %98 = vector.load %arg9[%c0_37, %c0_38, %c0_39, %c0_40] : memref<1x10x16x4xf32, #tpu.memory_space<vmem>>, vector<1x1x16x4xf32>
      tpu.vector_store %arg9[%c0_37, %c0_38, %c0_39, %c0_40], %97 {strides = array<i32>} : memref<1x10x16x4xf32, #tpu.memory_space<vmem>>, vector<1x1x16x4xf32>,
    } else {
    }
    %c1_i32 = arith.constant 1 : i32
    %8 = arith.cmpi slt, %arg1, %c1_i32 : i32
    %9 = arith.extui %8 : i1 to i32
    %c0_i32_9 = arith.constant 0 : i32
    %10 = arith.cmpi ne, %9, %c0_i32_9 : i32
    scf.if %10 {
      %c0_36 = arith.constant 0 : index
      %c0_37 = arith.constant 0 : index
      %c0_38 = arith.constant 0 : index
      %c0_39 = arith.constant 0 : index
      %97 = vector.load %arg4[%c0_36, %c0_37, %c0_38, %c0_39] : memref<1x1x16x4xf32, #tpu.memory_space<vmem>>, vector<1x1x16x4xf32>
      %c0_40 = arith.constant 0 : index
      %c9 = arith.constant 9 : index
      %c0_41 = arith.constant 0 : index
      %c0_42 = arith.constant 0 : index
      %98 = vector.load %arg9[%c0_40, %c9, %c0_41, %c0_42] : memref<1x10x16x4xf32, #tpu.memory_space<vmem>>, vector<1x1x16x4xf32>
      tpu.vector_store %arg9[%c0_40, %c9, %c0_41, %c0_42], %97 {strides = array<i32>} : memref<1x10x16x4xf32, #tpu.memory_space<vmem>>, vector<1x1x16x4xf32>,
    } else {
    }
    %c1_i32_10 = arith.constant 1 : i32
    %11 = arith.cmpi eq, %arg1, %c1_i32_10 : i32
    %12 = arith.extui %11 : i1 to i32
    %c0_i32_11 = arith.constant 0 : i32
    %13 = arith.cmpi ne, %12, %c0_i32_11 : i32
    scf.if %13 {
      %cst_36 = arith.constant 0.000000e+00 : f32
      %97 = vector.broadcast %cst_36 : f32 to vector<1x1x16x4xf32>
      %c0_37 = arith.constant 0 : index
      %c9 = arith.constant 9 : index
      %c0_38 = arith.constant 0 : index
      %c0_39 = arith.constant 0 : index
      %98 = vector.load %arg9[%c0_37, %c9, %c0_38, %c0_39] : memref<1x10x16x4xf32, #tpu.memory_space<vmem>>, vector<1x1x16x4xf32>
      tpu.vector_store %arg9[%c0_37, %c9, %c0_38, %c0_39], %97 {strides = array<i32>} : memref<1x10x16x4xf32, #tpu.memory_space<vmem>>, vector<1x1x16x4xf32>,
    } else {
    }
    %c0_12 = arith.constant 0 : index
    %c0_13 = arith.constant 0 : index
    %14 = vector.load %arg5[%c0_12, %c0_13] : memref<9x4xf32, #tpu.memory_space<vmem>>, vector<9x4xf32>
    %c0_14 = arith.constant 0 : index
    %c0_15 = arith.constant 0 : index
    %c0_16 = arith.constant 0 : index
    %c0_17 = arith.constant 0 : index
    %15 = vector.load %arg9[%c0_14, %c0_15, %c0_16, %c0_17] : memref<1x10x16x4xf32, #tpu.memory_space<vmem>>, vector<1x8x16x4xf32>
    %c0_18 = arith.constant 0 : index
    %c1_19 = arith.constant 1 : index
    %c0_20 = arith.constant 0 : index
    %c0_21 = arith.constant 0 : index
    %16 = vector.load %arg9[%c0_18, %c1_19, %c0_20, %c0_21] : memref<1x10x16x4xf32, #tpu.memory_space<vmem>>, vector<1x8x16x4xf32>
    %c0_22 = arith.constant 0 : index
    %c2 = arith.constant 2 : index
    %c0_23 = arith.constant 0 : index
    %c0_24 = arith.constant 0 : index
    %17 = vector.load %arg9[%c0_22, %c2, %c0_23, %c0_24] : memref<1x10x16x4xf32, #tpu.memory_space<vmem>>, vector<1x8x16x4xf32>
    %18 = vector.extract_strided_slice %14 {offsets = [0, 0], sizes = [1, 4], strides = [1, 1]} : vector<9x4xf32> to vector<1x4xf32>
    %19 = vector.shape_cast %18 : vector<1x4xf32> to vector<4xf32>
    %20 = vector.shape_cast %19 : vector<4xf32> to vector<1x1x1x4xf32>
    %21 = vector.broadcast %20 : vector<1x1x1x4xf32> to vector<1x8x16x4xf32>
    %22 = arith.mulf %15, %21 : vector<1x8x16x4xf32>
    %23 = vector.extract_strided_slice %14 {offsets = [3, 0], sizes = [1, 4], strides = [1, 1]} : vector<9x4xf32> to vector<1x4xf32>
    %24 = vector.shape_cast %23 : vector<1x4xf32> to vector<4xf32>
    %25 = vector.shape_cast %24 : vector<4xf32> to vector<1x1x1x4xf32>
    %26 = vector.broadcast %25 : vector<1x1x1x4xf32> to vector<1x8x16x4xf32>
    %27 = arith.mulf %16, %26 : vector<1x8x16x4xf32>
    %28 = arith.addf %22, %27 : vector<1x8x16x4xf32>
    %29 = vector.extract_strided_slice %14 {offsets = [6, 0], sizes = [1, 4], strides = [1, 1]} : vector<9x4xf32> to vector<1x4xf32>
    %30 = vector.shape_cast %29 : vector<1x4xf32> to vector<4xf32>
    %31 = vector.shape_cast %30 : vector<4xf32> to vector<1x1x1x4xf32>
    %32 = vector.broadcast %31 : vector<1x1x1x4xf32> to vector<1x8x16x4xf32>
    %33 = arith.mulf %17, %32 : vector<1x8x16x4xf32>
    %34 = arith.addf %28, %33 : vector<1x8x16x4xf32>
    %35 = vector.shape_cast %34 : vector<1x8x16x4xf32> to vector<128x4xf32>
    %36 = vector.extract_strided_slice %14 {offsets = [1, 0], sizes = [1, 4], strides = [1, 1]} : vector<9x4xf32> to vector<1x4xf32>
    %37 = vector.shape_cast %36 : vector<1x4xf32> to vector<4xf32>
    %38 = vector.shape_cast %37 : vector<4xf32> to vector<1x1x1x4xf32>
    %39 = vector.broadcast %38 : vector<1x1x1x4xf32> to vector<1x8x16x4xf32>
    %40 = arith.mulf %15, %39 : vector<1x8x16x4xf32>
    %41 = vector.extract_strided_slice %14 {offsets = [4, 0], sizes = [1, 4], strides = [1, 1]} : vector<9x4xf32> to vector<1x4xf32>
    %42 = vector.shape_cast %41 : vector<1x4xf32> to vector<4xf32>
    %43 = vector.shape_cast %42 : vector<4xf32> to vector<1x1x1x4xf32>
    %44 = vector.broadcast %43 : vector<1x1x1x4xf32> to vector<1x8x16x4xf32>
    %45 = arith.mulf %16, %44 : vector<1x8x16x4xf32>
    %46 = arith.addf %40, %45 : vector<1x8x16x4xf32>
    %47 = vector.extract_strided_slice %14 {offsets = [7, 0], sizes = [1, 4], strides = [1, 1]} : vector<9x4xf32> to vector<1x4xf32>
    %48 = vector.shape_cast %47 : vector<1x4xf32> to vector<4xf32>
    %49 = vector.shape_cast %48 : vector<4xf32> to vector<1x1x1x4xf32>
    %50 = vector.broadcast %49 : vector<1x1x1x4xf32> to vector<1x8x16x4xf32>
    %51 = arith.mulf %17, %50 : vector<1x8x16x4xf32>
    %52 = arith.addf %46, %51 : vector<1x8x16x4xf32>
    %53 = vector.shape_cast %52 : vector<1x8x16x4xf32> to vector<128x4xf32>
    %54 = vector.extract_strided_slice %14 {offsets = [2, 0], sizes = [1, 4], strides = [1, 1]} : vector<9x4xf32> to vector<1x4xf32>
    %55 = vector.shape_cast %54 : vector<1x4xf32> to vector<4xf32>
    %56 = vector.shape_cast %55 : vector<4xf32> to vector<1x1x1x4xf32>
    %57 = vector.broadcast %56 : vector<1x1x1x4xf32> to vector<1x8x16x4xf32>
    %58 = arith.mulf %15, %57 : vector<1x8x16x4xf32>
    %59 = vector.extract_strided_slice %14 {offsets = [5, 0], sizes = [1, 4], strides = [1, 1]} : vector<9x4xf32> to vector<1x4xf32>
    %60 = vector.shape_cast %59 : vector<1x4xf32> to vector<4xf32>
    %61 = vector.shape_cast %60 : vector<4xf32> to vector<1x1x1x4xf32>
    %62 = vector.broadcast %61 : vector<1x1x1x4xf32> to vector<1x8x16x4xf32>
    %63 = arith.mulf %16, %62 : vector<1x8x16x4xf32>
    %64 = arith.addf %58, %63 : vector<1x8x16x4xf32>
    %65 = vector.extract_strided_slice %14 {offsets = [8, 0], sizes = [1, 4], strides = [1, 1]} : vector<9x4xf32> to vector<1x4xf32>
    %66 = vector.shape_cast %65 : vector<1x4xf32> to vector<4xf32>
    %67 = vector.shape_cast %66 : vector<4xf32> to vector<1x1x1x4xf32>
    %68 = vector.broadcast %67 : vector<1x1x1x4xf32> to vector<1x8x16x4xf32>
    %69 = arith.mulf %17, %68 : vector<1x8x16x4xf32>
    %70 = arith.addf %64, %69 : vector<1x8x16x4xf32>
    %71 = vector.shape_cast %70 : vector<1x8x16x4xf32> to vector<128x4xf32>
    %72 = tpu.iota {dimensions = array<i32: 2>} : vector<1x8x16x4xi32>
    %73 = vector.shape_cast %72 : vector<1x8x16x4xi32> to vector<128x4xi32>
    %c0_i32_25 = arith.constant 0 : i32
    %74 = vector.broadcast %c0_i32_25 : i32 to vector<128x4xi32>
    %75 = arith.cmpi eq, %73, %74 : vector<128x4xi32>
    %76 = vector.extract_strided_slice %35 {offsets = [127, 0], sizes = [1, 4], strides = [1, 1]} : vector<128x4xf32> to vector<1x4xf32>
    %77 = vector.extract_strided_slice %35 {offsets = [0, 0], sizes = [127, 4], strides = [1, 1]} : vector<128x4xf32> to vector<127x4xf32>
    %78 = tpu.concatenate %76, %77 in 0 : vector<1x4xf32>, vector<127x4xf32> -> vector<128x4xf32>
    %cst = arith.constant 0.000000e+00 : f32
    %79 = vector.broadcast %cst : f32 to vector<128x4xf32>
    %80 = arith.select %75, %79, %78 : vector<128x4xi1>, vector<128x4xf32>
    %c15_i32 = arith.constant 15 : i32
    %81 = vector.broadcast %c15_i32 : i32 to vector<128x4xi32>
    %82 = arith.cmpi eq, %73, %81 : vector<128x4xi32>
    %83 = vector.extract_strided_slice %71 {offsets = [1, 0], sizes = [127, 4], strides = [1, 1]} : vector<128x4xf32> to vector<127x4xf32>
    %84 = vector.extract_strided_slice %71 {offsets = [0, 0], sizes = [1, 4], strides = [1, 1]} : vector<128x4xf32> to vector<1x4xf32>
    %85 = tpu.concatenate %83, %84 in 0 : vector<127x4xf32>, vector<1x4xf32> -> vector<128x4xf32>
    %cst_26 = arith.constant 0.000000e+00 : f32
    %86 = vector.broadcast %cst_26 : f32 to vector<128x4xf32>
    %87 = arith.select %82, %86, %85 : vector<128x4xi1>, vector<128x4xf32>
    %88 = arith.addf %53, %80 : vector<128x4xf32>
    %89 = arith.addf %88, %87 : vector<128x4xf32>
    %c0_27 = arith.constant 0 : index
    %c0_28 = arith.constant 0 : index
    %90 = vector.load %arg6[%c0_27, %c0_28] : memref<4x128xf32, #tpu.memory_space<vmem>>, vector<4x128xf32>
    %cst_29 = arith.constant dense<0.000000e+00> : vector<128x128xf32>
    %91 = tpu.matmul %89, %90, %cst_29 {dimension_numbers = #tpu.dot_dimension_numbers<[1], [0], [0], [1], [0, 0, 1, 1], [], []>} : vector<128x4xf32>, vector<4x128xf32>, vector<128x128xf32> -> vector<128x128xf32>
    %c0_30 = arith.constant 0 : index
    %c0_31 = arith.constant 0 : index
    %92 = vector.load %arg7[%c0_30, %c0_31] : memref<1x128xf32, #tpu.memory_space<vmem>>, vector<1x128xf32>
    %93 = vector.broadcast %92 : vector<1x128xf32> to vector<128x128xf32>
    %94 = arith.addf %91, %93 : vector<128x128xf32>
    %95 = vector.shape_cast %94 : vector<128x128xf32> to vector<1x8x16x128xf32>
    %c0_32 = arith.constant 0 : index
    %c0_33 = arith.constant 0 : index
    %c0_34 = arith.constant 0 : index
    %c0_35 = arith.constant 0 : index
    %96 = vector.load %arg8[%c0_32, %c0_33, %c0_34, %c0_35] : memref<1x8x16x128xf32, #tpu.memory_space<vmem>>, vector<1x8x16x128xf32>
    tpu.vector_store %arg8[%c0_32, %c0_33, %c0_34, %c0_35], %95 {strides = array<i32>} : memref<1x8x16x128xf32, #tpu.memory_space<vmem>>, vector<1x8x16x128xf32>,
    return
  }
  func.func @transform_0(%arg0: i32, %arg1: i32) -> (i32, i32, i32, i32) {
    %c0_i32 = arith.constant 0 : i32
    %c0_i32_0 = arith.constant 0 : i32
    %c0_i32_1 = arith.constant 0 : i32
    return %arg0, %arg1, %c0_i32, %c0_i32_0 : i32, i32, i32, i32
  }
  func.func @transform_1(%arg0: i32, %arg1: i32) -> (i32, i32, i32, i32) {
    %c8_i32 = arith.constant 8 : i32
    %0 = arith.muli %arg1, %c8_i32 : i32
    %c1_i32 = arith.constant 1 : i32
    %1 = arith.subi %0, %c1_i32 : i32
    %c0_i32 = arith.constant 0 : i32
    %2 = arith.maxsi %1, %c0_i32 : i32
    %c0_i32_0 = arith.constant 0 : i32
    %c0_i32_1 = arith.constant 0 : i32
    %c0_i32_2 = arith.constant 0 : i32
    return %arg0, %2, %c0_i32_0, %c0_i32_1 : i32, i32, i32, i32
  }
  func.func @transform_2(%arg0: i32, %arg1: i32) -> (i32, i32, i32, i32) {
    %c1_i32 = arith.constant 1 : i32
    %0 = arith.addi %arg1, %c1_i32 : i32
    %c8_i32 = arith.constant 8 : i32
    %1 = arith.muli %0, %c8_i32 : i32
    %c15_i32 = arith.constant 15 : i32
    %2 = arith.minsi %1, %c15_i32 : i32
    %c0_i32 = arith.constant 0 : i32
    %c0_i32_0 = arith.constant 0 : i32
    %c0_i32_1 = arith.constant 0 : i32
    return %arg0, %2, %c0_i32, %c0_i32_0 : i32, i32, i32, i32
  }
  func.func @transform_3(%arg0: i32, %arg1: i32) -> (i32, i32) {
    %c0_i32 = arith.constant 0 : i32
    %c0_i32_0 = arith.constant 0 : i32
    %c0_i32_1 = arith.constant 0 : i32
    return %c0_i32, %c0_i32_0 : i32, i32
  }
  func.func @transform_4(%arg0: i32, %arg1: i32) -> (i32, i32) {
    %c0_i32 = arith.constant 0 : i32
    %c0_i32_0 = arith.constant 0 : i32
    %c0_i32_1 = arith.constant 0 : i32
    return %c0_i32, %c0_i32_0 : i32, i32
  }
  func.func @transform_5(%arg0: i32, %arg1: i32) -> (i32, i32) {
    %c0_i32 = arith.constant 0 : i32
    %c0_i32_0 = arith.constant 0 : i32
    %c0_i32_1 = arith.constant 0 : i32
    return %c0_i32, %c0_i32_0 : i32, i32
  }
  func.func @transform_6(%arg0: i32, %arg1: i32) -> (i32, i32, i32, i32) {
    %c0_i32 = arith.constant 0 : i32
    %c0_i32_0 = arith.constant 0 : i32
    %c0_i32_1 = arith.constant 0 : i32
    return %arg0, %arg1, %c0_i32, %c0_i32_0 : i32, i32, i32, i32
  }
}

</mosaic_0001>

<llo_original>
// kernel: tpu_custom_call.1
$region0: #{tpu_custom_call.1}
  #allocation0 [shape = 'u32[]', space=smem, size = 0x4, offset = 0x4, fixed_abs, tag = 'smem constant byte address 0x4 - core index']
  #allocation1 [shape = 'u32[144,128]{1,0:T(1,128)}', space=vmem, size = 0x12000, scoped, tag = 'internal scratch']
  %s0 = inlined_call_operand.hbm [shape: f32[8,128], index: 0, kind: input, shape index: {}]
  %s1 = inlined_call_operand.hbm [shape: f32[8,128], index: 1, kind: output, shape index: {}]
  %s2 = sld [smem:[#allocation0]]
  $region18: #{tpu_custom_call.1} parent=0
    _
  %s4 = ssub.s32 1, %s2
  %s5 = scalar_select 0, %s4, %s2
  $region1: #{tpu_custom_call.1} parent=0
    #allocation2 [shape = 'u8[4096]{0}', space=vmem, size = 0x1000, scoped, tag = 'input window, operand 0, single buffered']
    #allocation3 [shape = 's32[1]{0}', space=sflag, size = 0x4, scoped, tag = 'scoped memory for tpu_custom_call.1']
    #allocation4 [shape = 's32[1]{0}', space=sflag, size = 0x4, scoped, tag = 'scoped memory for tpu_custom_call.1']
    #allocation5 [shape = 'u8[4096]{0}', space=vmem, size = 0x1000, scoped, tag = 'output window, operand 0, single buffered']
    %6 = vsyncpa [#allocation3], 0
    %7 = vsyncpa [#allocation4], 0
    // Predicated region
    $region2: #{tpu_custom_call.1} parent=1 // pred_check
      _
    $region3: #{tpu_custom_call.1} parent=1 // pred_check_branch
      %9 = sbr.rel (0) target = $region5
    $region4: #{tpu_custom_call.1} parent=1 // pred_region
      %s11 = ssub.s32 128, 128
      %12 = vsyncadd [#allocation3], %s11
      %s14 = sshll.u32 [#allocation2], 4
      %s15 = int_to_ptr.vmem [resolvable:$true] %s14
      %17 = dma.hbm_to_vmem [thread:$0]  %s0, 128, %s15, [#allocation3]
    $region5: #{tpu_custom_call.1} parent=1 // pred_fallthru
      _
    // Predicated region
    $region6: #{tpu_custom_call.1} parent=1 // pred_check
      _
    $region7: #{tpu_custom_call.1} parent=1 // pred_check_branch
      %19 = sbr.rel (0) target = $region9
    $region8: #{tpu_custom_call.1} parent=1 // pred_region
      %20 = dma.done [#allocation3], 128
    $region9: #{tpu_custom_call.1} parent=1 // pred_fallthru
      _
    %v21 = vld [vmem:[#allocation2] sm:$0xff]
    %v22 = vrot.slane %v21, 7
    %23 = vst [vmem:[#allocation5] sm:$0xff] %v22
    // Predicated region
    $region10: #{tpu_custom_call.1} parent=1 // pred_check
      _
    $region11: #{tpu_custom_call.1} parent=1 // pred_check_branch
      %25 = sbr.rel (0) target = $region13
    $region12: #{tpu_custom_call.1} parent=1 // pred_region
      %s27 = ssub.s32 128, 128
      %28 = vsyncadd [#allocation4], %s27
      %s30 = sshll.u32 [#allocation5], 4
      %s31 = int_to_ptr.vmem [resolvable:$true] %s30
      %33 = dma.vmem_to_hbm [thread:$0]  %s31, 128, %s1, [#allocation4]
    $region13: #{tpu_custom_call.1} parent=1 // pred_fallthru
      _
    // Predicated region
    $region14: #{tpu_custom_call.1} parent=1 // pred_check
      _
    $region15: #{tpu_custom_call.1} parent=1 // pred_check_branch
      %35 = sbr.rel (0) target = $region17
    $region16: #{tpu_custom_call.1} parent=1 // pred_region
      %36 = dma.done [#allocation4], 128
    $region17: #{tpu_custom_call.1} parent=1 // pred_fallthru
      _
    %37 = vsyncpa [#allocation3], 1
    %38 = vsyncpa [#allocation4], 1

// kernel: tpu_custom_call.1
$region0: #{tpu_custom_call.1}
  #allocation0 [shape = 'u32[]', space=smem, size = 0x4, offset = 0x4, fixed_abs, tag = 'smem constant byte address 0x4 - core index']
  #allocation1 [shape = 'u32[144,128]{1,0:T(1,128)}', space=vmem, size = 0x12000, scoped, tag = 'internal scratch']
  #allocation2 [shape = 'f32[1,10,16,4]{3,2,1,0:T(8,128)}', space=vmem, size = 0x14000, scoped, tag = 'scratch operand']
  %s0 = inlined_call_operand.vmem [shape: f32[2,16,16,4], index: 0, kind: input, shape index: {}]
  %s1 = inlined_call_operand.vmem [shape: f32[2,16,16,4], index: 1, kind: input, shape index: {}]
  %s2 = inlined_call_operand.vmem [shape: f32[2,16,16,4], index: 2, kind: input, shape index: {}]
  %s3 = inlined_call_operand.vmem [shape: f32[9,4], index: 3, kind: input, shape index: {}]
  %s4 = inlined_call_operand.vmem [shape: f32[4,128], index: 4, kind: input, shape index: {}]
  %s5 = inlined_call_operand.vmem [shape: f32[1,128], index: 5, kind: input, shape index: {}]
  %s6 = inlined_call_operand.hbm [shape: f32[2,16,16,128], index: 6, kind: output, shape index: {}]
  %s7 = sld [smem:[#allocation0]]
  $region73: #{tpu_custom_call.1} parent=0
    _
  %s9 = ssub.s32 1, %s7
  %s10 = scalar_select 0, %s9, %s7
  $region1: #{tpu_custom_call.1} parent=0
    #allocation3 [shape = 'u8[131072]{0}', space=vmem, size = 0x20000, scoped, tag = 'output window, operand 0']
    #allocation4 [shape = 's32[2]{0}', space=sflag, size = 0x8, scoped, tag = 'scoped memory for tpu_custom_call.1']
    %11 = vsyncpa [#allocation4], 0
    %s12 = scalar_lea.sflag [#allocation4], 1
    %13 = vsyncpa %s12, 0
    loop: start=0, step=1, limit=6
    $region2: #{tpu_custom_call.1} parent=1 // loop_pre_header
      _
    $region3: #{tpu_custom_call.1} parent=1 // loop_header
      %s15 = sphi 0, %s19
      %p16 = scmp.ge.s32.totalorder %s15, 6
      %s22 = sphi 0, %s34
      %s23 = sphi 0, %s30
      %s24 = sphi 0, %s22
      %s25 = sphi 0, %s23
      %s26 = sphi 0, %s24
      %s27 = sphi 0, %s25
      %s39 = sphi 0, %s41
      %s42 = sphi 0, %s39
      %s43 = sphi 0, %s42
      %s59 = sphi 0, %s43
      %s75 = sphi 0, %s77
      %s78 = sphi 0, %s75
      %s79 = sphi 0, %s78
      %s95 = sphi 0, %s79
      %s111 = sphi 0, %s113
      %s114 = sphi 0, %s111
      %s115 = sphi 0, %s114
      %s131 = sphi 0, %s115
      %s135 = sphi 0, %s135
      %s137 = sphi 0, %s135
      %s138 = sphi 0, %s137
      %s152 = sphi 0, %s138
      %s156 = sphi 0, %s156
      %s158 = sphi 0, %s156
      %s159 = sphi 0, %s158
      %s173 = sphi 0, %s159
      %s177 = sphi 0, %s177
      %s179 = sphi 0, %s177
      %s180 = sphi 0, %s179
      %s194 = sphi 0, %s180
      %s202 = sphi 0, %s204
      %s205 = sphi 0, %s202
      %s206 = sphi 0, %s205
      %s222 = sphi 0, %s206
    $region4: #{tpu_custom_call.1} parent=1 // loop_header_branch
      %18 = sbr.rel (%p16) target = $region8
    $region5: #{tpu_custom_call.1} parent=1 // loop_body
      %s20 = ssub.s32 %s15, 1
      %s21 = ssub.s32 %s15, 2
      %s28 = sadd.s32 1, %s23
      %p29 = scmp.ge.s32.totalorder %s28, 2
      %s30 = scalar_select %p29, 0, %s28
      %s31 = sadd.s32 1, %s22
      %s32 = scalar_select %p29, %s31, %s22
      %p33 = scmp.ge.s32.totalorder %s32, 2
      %s34 = scalar_select %p33, 0, %s32
      %s35 = ssub.s32 %s22, %s34
      %s36 = ssub.s32 %s23, %s30
      %s37 = sor.u32 %s35, %s36
      %p38 = scmp.eq.s32.totalorder %s37, 0
      %s40 = sadd.s32 %s39, 1
      %s41 = scalar_select %p38, %s39, %s40
      %p44 = pneg %p38
      %p45 = scmp.eq.s32.totalorder %s15, 3
      %p46 = por %p44, %p45
      %p47 = scmp.ne.s32.totalorder %s39, %s42
      %p48 = scmp.eq.s32.totalorder %s15, 0
      %p49 = por %p47, %p48
      %p50 = scmp.ne.s32.totalorder %s39, %s42
      %p51 = scmp.eq.s32.totalorder %s20, 3
      %p52 = por %p50, %p51
      %p53 = scmp.ne.s32.totalorder %s42, %s43
      %p54 = scmp.eq.s32.totalorder %s20, 0
      %p55 = por %p53, %p54
      %p56 = scmp.ne.s32.totalorder %s42, %s43
      %p57 = scmp.eq.s32.totalorder %s21, 3
      %p58 = por %p56, %p57
      %p60 = scmp.ne.s32.totalorder %s43, %s59
      %p61 = scmp.eq.s32.totalorder %s21, 0
      %p62 = por %p60, %p61
      %s63 = smul.u32 %s23, 8
      %s64 = ssub.s32 %s63, 1
      %p65 = scmp.gt.s32.totalorder %s64, 0
      %s66 = scalar_select %p65, %s64, 0
      %s67 = smul.u32 %s30, 8
      %s68 = ssub.s32 %s67, 1
      %p69 = scmp.gt.s32.totalorder %s68, 0
      %s70 = scalar_select %p69, %s68, 0
      %s71 = ssub.s32 %s22, %s34
      %s72 = ssub.s32 %s66, %s70
      %s73 = sor.u32 %s71, %s72
      %p74 = scmp.eq.s32.totalorder %s73, 0
      %s76 = sadd.s32 %s75, 1
      %s77 = scalar_select %p74, %s75, %s76
      %p80 = pneg %p74
      %p81 = scmp.eq.s32.totalorder %s15, 3
      %p82 = por %p80, %p81
      %p83 = scmp.ne.s32.totalorder %s75, %s78
      %p84 = scmp.eq.s32.totalorder %s15, 0
      %p85 = por %p83, %p84
      %p86 = scmp.ne.s32.totalorder %s75, %s78
      %p87 = scmp.eq.s32.totalorder %s20, 3
      %p88 = por %p86, %p87
      %p89 = scmp.ne.s32.totalorder %s78, %s79
      %p90 = scmp.eq.s32.totalorder %s20, 0
      %p91 = por %p89, %p90
      %p92 = scmp.ne.s32.totalorder %s78, %s79
      %p93 = scmp.eq.s32.totalorder %s21, 3
      %p94 = por %p92, %p93
      %p96 = scmp.ne.s32.totalorder %s79, %s95
      %p97 = scmp.eq.s32.totalorder %s21, 0
      %p98 = por %p96, %p97
      %s99 = sadd.s32 %s23, 1
      %s100 = smul.u32 %s99, 8
      %p101 = scmp.lt.s32.totalorder %s100, 15
      %s102 = scalar_select %p101, %s100, 15
      %s103 = sadd.s32 %s30, 1
      %s104 = smul.u32 %s103, 8
      %p105 = scmp.lt.s32.totalorder %s104, 15
      %s106 = scalar_select %p105, %s104, 15
      %s107 = ssub.s32 %s22, %s34
      %s108 = ssub.s32 %s102, %s106
      %s109 = sor.u32 %s107, %s108
      %p110 = scmp.eq.s32.totalorder %s109, 0
      %s112 = sadd.s32 %s111, 1
      %s113 = scalar_select %p110, %s111, %s112
      %p116 = pneg %p110
      %p117 = scmp.eq.s32.totalorder %s15, 3
      %p118 = por %p116, %p117
      %p119 = scmp.ne.s32.totalorder %s111, %s114
      %p120 = scmp.eq.s32.totalorder %s15, 0
      %p121 = por %p119, %p120
      %p122 = scmp.ne.s32.totalorder %s111, %s114
      %p123 = scmp.eq.s32.totalorder %s20, 3
      %p124 = por %p122, %p123
      %p125 = scmp.ne.s32.totalorder %s114, %s115
      %p126 = scmp.eq.s32.totalorder %s20, 0
      %p127 = por %p125, %p126
      %p128 = scmp.ne.s32.totalorder %s114, %s115
      %p129 = scmp.eq.s32.totalorder %s21, 3
      %p130 = por %p128, %p129
      %p132 = scmp.ne.s32.totalorder %s115, %s131
      %p133 = scmp.eq.s32.totalorder %s21, 0
      %p134 = por %p132, %p133
      %s136 = sadd.s32 %s135, 1
      %p139 = scmp.eq.s32.totalorder %s15, 3
      %p140 = scmp.ne.s32.totalorder %s135, %s137
      %p141 = scmp.eq.s32.totalorder %s15, 0
      %p142 = por %p140, %p141
      %p143 = scmp.ne.s32.totalorder %s135, %s137
      %p144 = scmp.eq.s32.totalorder %s20, 3
      %p145 = por %p143, %p144
      %p146 = scmp.ne.s32.totalorder %s137, %s138
      %p147 = scmp.eq.s32.totalorder %s20, 0
      %p148 = por %p146, %p147
      %p149 = scmp.ne.s32.totalorder %s137, %s138
      %p150 = scmp.eq.s32.totalorder %s21, 3
      %p151 = por %p149, %p150
      %p153 = scmp.ne.s32.totalorder %s138, %s152
      %p154 = scmp.eq.s32.totalorder %s21, 0
      %p155 = por %p153, %p154
      %s157 = sadd.s32 %s156, 1
      %p160 = scmp.eq.s32.totalorder %s15, 3
      %p161 = scmp.ne.s32.totalorder %s156, %s158
      %p162 = scmp.eq.s32.totalorder %s15, 0
      %p163 = por %p161, %p162
      %p164 = scmp.ne.s32.totalorder %s156, %s158
      %p165 = scmp.eq.s32.totalorder %s20, 3
      %p166 = por %p164, %p165
      %p167 = scmp.ne.s32.totalorder %s158, %s159
      %p168 = scmp.eq.s32.totalorder %s20, 0
      %p169 = por %p167, %p168
      %p170 = scmp.ne.s32.totalorder %s158, %s159
      %p171 = scmp.eq.s32.totalorder %s21, 3
      %p172 = por %p170, %p171
      %p174 = scmp.ne.s32.totalorder %s159, %s173
      %p175 = scmp.eq.s32.totalorder %s21, 0
      %p176 = por %p174, %p175
      %s178 = sadd.s32 %s177, 1
      %p181 = scmp.eq.s32.totalorder %s15, 3
      %p182 = scmp.ne.s32.totalorder %s177, %s179
      %p183 = scmp.eq.s32.totalorder %s15, 0
      %p184 = por %p182, %p183
      %p185 = scmp.ne.s32.totalorder %s177, %s179
      %p186 = scmp.eq.s32.totalorder %s20, 3
      %p187 = por %p185, %p186
      %p188 = scmp.ne.s32.totalorder %s179, %s180
      %p189 = scmp.eq.s32.totalorder %s20, 0
      %p190 = por %p188, %p189
      %p191 = scmp.ne.s32.totalorder %s179, %s180
      %p192 = scmp.eq.s32.totalorder %s21, 3
      %p193 = por %p191, %p192
      %p195 = scmp.ne.s32.totalorder %s180, %s194
      %p196 = scmp.eq.s32.totalorder %s21, 0
      %p197 = por %p195, %p196
      %s198 = ssub.s32 %s22, %s34
      %s199 = ssub.s32 %s23, %s30
      %s200 = sor.u32 %s198, %s199
      %p201 = scmp.eq.s32.totalorder %s200, 0
      %s203 = sadd.s32 %s202, 1
      %s204 = scalar_select %p201, %s202, %s203
      %p207 = pneg %p201
      %p208 = scmp.eq.s32.totalorder %s15, 3
      %p209 = por %p207, %p208
      %p210 = scmp.ne.s32.totalorder %s202, %s205
      %p211 = scmp.eq.s32.totalorder %s15, 0
      %p212 = por %p210, %p211
      %p213 = scmp.ne.s32.totalorder %s202, %s205
      %p214 = scmp.eq.s32.totalorder %s20, 3
      %p215 = por %p213, %p214
      %p216 = scmp.ne.s32.totalorder %s205, %s206
      %p217 = scmp.eq.s32.totalorder %s20, 0
      %p218 = por %p216, %p217
      %p219 = scmp.ne.s32.totalorder %s205, %s206
      %p220 = scmp.eq.s32.totalorder %s21, 3
      %p221 = por %p219, %p220
      %p223 = scmp.ne.s32.totalorder %s206, %s222
      %p224 = scmp.eq.s32.totalorder %s21, 0
      %p225 = por %p223, %p224
      %p226 = scmp.le.s32.totalorder 1, %s15
      %p227 = scmp.lt.s32.totalorder %s15, 5
      %p228 = pnand %p226, %p227
      %p229 = pneg %p228
      // Predicated region
      $region9: #{tpu_custom_call.1} parent=5 // pred_check
        _
      $region10: #{tpu_custom_call.1} parent=5 // pred_check_branch
        %231 = sbr.rel (%p228) target = $region12
      $region11: #{tpu_custom_call.1} parent=5 // pred_region
        %s232 = ssub.s32 %s15, 1
        // Predicated region
        $region13: #{tpu_custom_call.1} parent=11 // pred_check
          %p233 = pneg %p148
        $region14: #{tpu_custom_call.1} parent=11 // pred_check_branch
          %235 = sbr.rel (%p233) target = $region16
        $region15: #{tpu_custom_call.1} parent=11 // pred_region
          _
        $region16: #{tpu_custom_call.1} parent=11 // pred_fallthru
          _
        // Predicated region
        $region17: #{tpu_custom_call.1} parent=11 // pred_check
          %p236 = pneg %p169
        $region18: #{tpu_custom_call.1} parent=11 // pred_check_branch
          %238 = sbr.rel (%p236) target = $region20
        $region19: #{tpu_custom_call.1} parent=11 // pred_region
          _
        $region20: #{tpu_custom_call.1} parent=11 // pred_fallthru
          _
        // Predicated region
        $region21: #{tpu_custom_call.1} parent=11 // pred_check
          %p239 = pneg %p190
        $region22: #{tpu_custom_call.1} parent=11 // pred_check_branch
          %241 = sbr.rel (%p239) target = $region24
        $region23: #{tpu_custom_call.1} parent=11 // pred_region
          _
        $region24: #{tpu_custom_call.1} parent=11 // pred_fallthru
          _
      $region12: #{tpu_custom_call.1} parent=5 // pred_fallthru
        _
      %p242 = scmp.lt.s32.totalorder %s15, 4
      // Predicated region
      $region25: #{tpu_custom_call.1} parent=5 // pred_check
        %p243 = pneg %p242
      $region26: #{tpu_custom_call.1} parent=5 // pred_check_branch
        %245 = sbr.rel (%p243) target = $region28
      $region27: #{tpu_custom_call.1} parent=5 // pred_region
        // Predicated region
        $region29: #{tpu_custom_call.1} parent=27 // pred_check
          %p246 = pneg %p49
        $region30: #{tpu_custom_call.1} parent=27 // pred_check_branch
          %248 = sbr.rel (%p246) target = $region32
        $region31: #{tpu_custom_call.1} parent=27 // pred_region
          %s249 = smul.u32 8, %s23
          %p250 = scmp.lt.s32.totalorder %s22, 1
          %s251 = scalar_select %p250, %s22, 1
          %p252 = scmp.lt.s32.totalorder %s249, 15
          %s253 = scalar_select %p252, %s249, 15
          %s254 = smul.addr %s253, 2
          %s255 = smul.addr %s251, 32
          %s256 = sadd.s32 %s254, %s255
          %s257 = smul.addr %s256, 8
          %s258 = scalar_lea.vmem %s0, %s257
          %s259 = smul.u32 8, %s23
        $region32: #{tpu_custom_call.1} parent=27 // pred_fallthru
          _
        // Predicated region
        $region33: #{tpu_custom_call.1} parent=27 // pred_check
          %p260 = pneg %p85
        $region34: #{tpu_custom_call.1} parent=27 // pred_check_branch
          %262 = sbr.rel (%p260) target = $region36
        $region35: #{tpu_custom_call.1} parent=27 // pred_region
          %s263 = smul.u32 %s23, 8
          %s264 = ssub.s32 %s263, 1
          %p265 = scmp.gt.s32.totalorder %s264, 0
          %s266 = scalar_select %p265, %s264, 0
          %p267 = scmp.lt.s32.totalorder %s22, 1
          %s268 = scalar_select %p267, %s22, 1
          %p269 = scmp.lt.s32.totalorder %s266, 15
          %s270 = scalar_select %p269, %s266, 15
          %s271 = smul.addr %s270, 2
          %s272 = smul.addr %s268, 32
          %s273 = sadd.s32 %s271, %s272
          %s274 = smul.addr %s273, 8
          %s275 = scalar_lea.vmem %s1, %s274
          %s276 = smul.u32 %s23, 8
          %s277 = ssub.s32 %s276, 1
          %p278 = scmp.gt.s32.totalorder %s277, 0
          %s279 = scalar_select %p278, %s277, 0
        $region36: #{tpu_custom_call.1} parent=27 // pred_fallthru
          _
        // Predicated region
        $region37: #{tpu_custom_call.1} parent=27 // pred_check
          %p280 = pneg %p121
        $region38: #{tpu_custom_call.1} parent=27 // pred_check_branch
          %282 = sbr.rel (%p280) target = $region40
        $region39: #{tpu_custom_call.1} parent=27 // pred_region
          %s283 = sadd.s32 %s23, 1
          %s284 = smul.u32 %s283, 8
          %p285 = scmp.lt.s32.totalorder %s284, 15
          %s286 = scalar_select %p285, %s284, 15
          %p287 = scmp.lt.s32.totalorder %s22, 1
          %s288 = scalar_select %p287, %s22, 1
          %p289 = scmp.lt.s32.totalorder %s286, 15
          %s290 = scalar_select %p289, %s286, 15
          %s291 = smul.addr %s290, 2
          %s292 = smul.addr %s288, 32
          %s293 = sadd.s32 %s291, %s292
          %s294 = smul.addr %s293, 8
          %s295 = scalar_lea.vmem %s2, %s294
          %s296 = sadd.s32 %s23, 1
          %s297 = smul.u32 %s296, 8
          %p298 = scmp.lt.s32.totalorder %s297, 15
          %s299 = scalar_select %p298, %s297, 15
        $region40: #{tpu_custom_call.1} parent=27 // pred_fallthru
          _
      $region28: #{tpu_custom_call.1} parent=5 // pred_fallthru
        _
      %p300 = scmp.le.s32.totalorder 1, %s15
      %p301 = scmp.lt.s32.totalorder %s15, 5
      %p302 = pnand %p300, %p301
      %p303 = pneg %p302
      // Predicated region
      $region41: #{tpu_custom_call.1} parent=5 // pred_check
        _
      $region42: #{tpu_custom_call.1} parent=5 // pred_check_branch
        %305 = sbr.rel (%p302) target = $region44
      $region43: #{tpu_custom_call.1} parent=5 // pred_region
        %s306 = ssub.s32 %s15, 1
        %s307 = smul.u32 8, %s25
        %p308 = scmp.lt.s32.totalorder %s24, 1
        %s309 = scalar_select %p308, %s24, 1
        %p310 = scmp.lt.s32.totalorder %s307, 15
        %s311 = scalar_select %p310, %s307, 15
        %s312 = smul.addr %s311, 2
        %s313 = smul.addr %s309, 32
        %s314 = sadd.s32 %s312, %s313
        %s315 = smul.addr %s314, 8
        %s316 = scalar_lea.vmem %s0, %s315
        %p317 = pneg %p55
        %p318 = pneg %p52
        %s319 = smul.u32 %s25, 8
        %s320 = ssub.s32 %s319, 1
        %p321 = scmp.gt.s32.totalorder %s320, 0
        %s322 = scalar_select %p321, %s320, 0
        %p323 = scmp.lt.s32.totalorder %s24, 1
        %s324 = scalar_select %p323, %s24, 1
        %p325 = scmp.lt.s32.totalorder %s322, 15
        %s326 = scalar_select %p325, %s322, 15
        %s327 = smul.addr %s326, 2
        %s328 = smul.addr %s324, 32
        %s329 = sadd.s32 %s327, %s328
        %s330 = smul.addr %s329, 8
        %s331 = scalar_lea.vmem %s1, %s330
        %p332 = pneg %p91
        %p333 = pneg %p88
        %s334 = sadd.s32 %s25, 1
        %s335 = smul.u32 %s334, 8
        %p336 = scmp.lt.s32.totalorder %s335, 15
        %s337 = scalar_select %p336, %s335, 15
        %p338 = scmp.lt.s32.totalorder %s24, 1
        %s339 = scalar_select %p338, %s24, 1
        %p340 = scmp.lt.s32.totalorder %s337, 15
        %s341 = scalar_select %p340, %s337, 15
        %s342 = smul.addr %s341, 2
        %s343 = smul.addr %s339, 32
        %s344 = sadd.s32 %s342, %s343
        %s345 = smul.addr %s344, 8
        %s346 = scalar_lea.vmem %s2, %s345
        %p347 = pneg %p127
        %p348 = pneg %p124
        %p349 = pneg %p148
        %p350 = pneg %p145
        %p351 = pneg %p169
        %p352 = pneg %p166
        %p353 = pneg %p190
        %p354 = pneg %p187
        %p355 = pneg %p218
        %p356 = pneg %p215
        %s357 = sand.u32 %s205, 1
        %s358 = scalar_lea.sflag [#allocation4], %s357
        %s359 = sand.u32 %s205, 1
        %s360 = smul.addr %s359, 128
        %s361 = scalar_lea.vmem [#allocation3], %s360
        %s362 = smul.u32 8, %s25
        %p363 = scmp.lt.s32.totalorder %s24, 1
        %s364 = scalar_select %p363, %s24, 1
        %p365 = scmp.lt.s32.totalorder %s362, 15
        %s366 = scalar_select %p365, %s362, 15
        %s367 = smul.addr %s366, 2
        %s368 = smul.addr %s364, 32
        %s369 = sadd.s32 %s367, %s368
        %s370 = smul.addr %s369, 8
        %s371 = scalar_lea.vmem %s0, %s370
        %s372 = smul.u32 8, %s25
        %s373 = smul.u32 %s25, 8
        %s374 = ssub.s32 %s373, 1
        %p375 = scmp.gt.s32.totalorder %s374, 0
        %s376 = scalar_select %p375, %s374, 0
        %p377 = scmp.lt.s32.totalorder %s24, 1
        %s378 = scalar_select %p377, %s24, 1
        %p379 = scmp.lt.s32.totalorder %s376, 15
        %s380 = scalar_select %p379, %s376, 15
        %s381 = smul.addr %s380, 2
        %s382 = smul.addr %s378, 32
        %s383 = sadd.s32 %s381, %s382
        %s384 = smul.addr %s383, 8
        %s385 = scalar_lea.vmem %s1, %s384
        %s386 = smul.u32 %s25, 8
        %s387 = ssub.s32 %s386, 1
        %p388 = scmp.gt.s32.totalorder %s387, 0
        %s389 = scalar_select %p388, %s387, 0
        %s390 = sadd.s32 %s25, 1
        %s391 = smul.u32 %s390, 8
        %p392 = scmp.lt.s32.totalorder %s391, 15
        %s393 = scalar_select %p392, %s391, 15
        %p394 = scmp.lt.s32.totalorder %s24, 1
        %s395 = scalar_select %p394, %s24, 1
        %p396 = scmp.lt.s32.totalorder %s393, 15
        %s397 = scalar_select %p396, %s393, 15
        %s398 = smul.addr %s397, 2
        %s399 = smul.addr %s395, 32
        %s400 = sadd.s32 %s398, %s399
        %s401 = smul.addr %s400, 8
        %s402 = scalar_lea.vmem %s2, %s401
        %s403 = sadd.s32 %s25, 1
        %s404 = smul.u32 %s403, 8
        %p405 = scmp.lt.s32.totalorder %s404, 15
        %s406 = scalar_select %p405, %s404, 15
        %s407 = smul.u32 8, %s25
        %v408 = vld [vmem:[%s371] sm:$0xff]
        %v409 = vld [vmem:[%s371 + $0x8] sm:$0xff]
        %v410 = vld [vmem:[%s371 + $0x10] sm:$0xff]
        %v411 = vld [vmem:[%s371 + $0x18] sm:$0xff]
        %v412 = vld [vmem:[%s371 + $0x20] sm:$0xff]
        %v413 = vld [vmem:[%s371 + $0x28] sm:$0xff]
        %v414 = vld [vmem:[%s371 + $0x30] sm:$0xff]
        %v415 = vld [vmem:[%s371 + $0x38] sm:$0xff]
        %v416 = vld [vmem:[%s371 + $0x40] sm:$0xff]
        %v417 = vld [vmem:[%s371 + $0x48] sm:$0xff]
        %v418 = vld [vmem:[%s371 + $0x50] sm:$0xff]
        %v419 = vld [vmem:[%s371 + $0x58] sm:$0xff]
        %v420 = vld [vmem:[%s371 + $0x60] sm:$0xff]
        %v421 = vld [vmem:[%s371 + $0x68] sm:$0xff]
        %v422 = vld [vmem:[%s371 + $0x70] sm:$0xff]
        %v423 = vld [vmem:[%s371 + $0x78] sm:$0xff]
        %s424 = scalar_lea.vmem [#allocation2], 16
        %vm425 = vcmask 31744
        %426 = vst.msk [vmem:[%s424] sm:$0xff] %vm425, %v408
        %427 = vst.msk [vmem:[%s424 + $0x8] sm:$0xff] %vm425, %v409
        %428 = vst.msk [vmem:[%s424 + $0x10] sm:$0xff] %vm425, %v410
        %429 = vst.msk [vmem:[%s424 + $0x18] sm:$0xff] %vm425, %v411
        %430 = vst.msk [vmem:[%s424 + $0x20] sm:$0xff] %vm425, %v412
        %431 = vst.msk [vmem:[%s424 + $0x28] sm:$0xff] %vm425, %v413
        %432 = vst.msk [vmem:[%s424 + $0x30] sm:$0xff] %vm425, %v414
        %433 = vst.msk [vmem:[%s424 + $0x38] sm:$0xff] %vm425, %v415
        %434 = vst.msk [vmem:[%s424 + $0x40] sm:$0xff] %vm425, %v416
        %435 = vst.msk [vmem:[%s424 + $0x48] sm:$0xff] %vm425, %v417
        %436 = vst.msk [vmem:[%s424 + $0x50] sm:$0xff] %vm425, %v418
        %437 = vst.msk [vmem:[%s424 + $0x58] sm:$0xff] %vm425, %v419
        %438 = vst.msk [vmem:[%s424 + $0x60] sm:$0xff] %vm425, %v420
        %439 = vst.msk [vmem:[%s424 + $0x68] sm:$0xff] %vm425, %v421
        %440 = vst.msk [vmem:[%s424 + $0x70] sm:$0xff] %vm425, %v422
        %441 = vst.msk [vmem:[%s424 + $0x78] sm:$0xff] %vm425, %v423
        %p442 = scmp.gt.s32.totalorder %s25, 0
        // Predicated region
        $region45: #{tpu_custom_call.1} parent=43 // pred_check
          %p443 = pneg %p442
        $region46: #{tpu_custom_call.1} parent=43 // pred_check_branch
          %445 = sbr.rel (%p443) target = $region48
        $region47: #{tpu_custom_call.1} parent=43 // pred_region
          %v446 = vld [vmem:[%s385] sm:$0xff]
          %v447 = vld [vmem:[%s385 + $0x8] sm:$0xff]
          %448 = vst.msk [vmem:[#allocation2] sm:$0xff] %vm425, %v446
          %449 = vst.msk [vmem:[#allocation2 + $0x8] sm:$0xff] %vm425, %v447
        $region48: #{tpu_custom_call.1} parent=43 // pred_fallthru
          _
        %p450 = scmp.eq.s32.totalorder %s25, 0
        // Predicated region
        $region49: #{tpu_custom_call.1} parent=43 // pred_check
          %p451 = pneg %p450
        $region50: #{tpu_custom_call.1} parent=43 // pred_check_branch
          %453 = sbr.rel (%p451) target = $region52
        $region51: #{tpu_custom_call.1} parent=43 // pred_region
          %454 = vst.msk [vmem:[#allocation2] sm:$0xff] %vm425, 0.0
          %455 = vst.msk [vmem:[#allocation2 + $0x8] sm:$0xff] %vm425, 0.0
        $region52: #{tpu_custom_call.1} parent=43 // pred_fallthru
          _
        %p456 = scmp.lt.s32.totalorder %s25, 1
        // Predicated region
        $region53: #{tpu_custom_call.1} parent=43 // pred_check
          %p457 = pneg %p456
        $region54: #{tpu_custom_call.1} parent=43 // pred_check_branch
          %459 = sbr.rel (%p457) target = $region56
        $region55: #{tpu_custom_call.1} parent=43 // pred_region
          %v460 = vld [vmem:[%s402] sm:$0xff]
          %v461 = vld [vmem:[%s402 + $0x8] sm:$0xff]
          %s462 = scalar_lea.vmem [#allocation2], 144
          %463 = vst.msk [vmem:[%s462] sm:$0xff] %vm425, %v460
          %464 = vst.msk [vmem:[%s462 + $0x8] sm:$0xff] %vm425, %v461
        $region56: #{tpu_custom_call.1} parent=43 // pred_fallthru
          _
        %p465 = scmp.eq.s32.totalorder %s25, 1
        // Predicated region
        $region57: #{tpu_custom_call.1} parent=43 // pred_check
          %p466 = pneg %p465
        $region58: #{tpu_custom_call.1} parent=43 // pred_check_branch
          %468 = sbr.rel (%p466) target = $region60
        $region59: #{tpu_custom_call.1} parent=43 // pred_region
          %s469 = scalar_lea.vmem [#allocation2], 144
          %470 = vst.msk [vmem:[%s469] sm:$0xff] %vm425, 0.0
          %471 = vst.msk [vmem:[%s469 + $0x8] sm:$0xff] %vm425, 0.0
        $region60: #{tpu_custom_call.1} parent=43 // pred_fallthru
          _
        %v472 = vld [vmem:[%s3] sm:$0xff]
        %v473 = vld [vmem:[%s3 + $0x8] sm:$0x1]
        %v474 = vld [vmem:[#allocation2] sm:$0xff]
        %v475 = vld [vmem:[#allocation2 + $0x8] sm:$0xff]
        %v476 = vld [vmem:[#allocation2 + $0x10] sm:$0xff]
        %v477 = vld [vmem:[#allocation2 + $0x18] sm:$0xff]
        %v478 = vld [vmem:[#allocation2 + $0x20] sm:$0xff]
        %v479 = vld [vmem:[#allocation2 + $0x28] sm:$0xff]
        %v480 = vld [vmem:[#allocation2 + $0x30] sm:$0xff]
        %v481 = vld [vmem:[#allocation2 + $0x38] sm:$0xff]
        %v482 = vld [vmem:[#allocation2 + $0x40] sm:$0xff]
        %v483 = vld [vmem:[#allocation2 + $0x48] sm:$0xff]
        %v484 = vld [vmem:[#allocation2 + $0x50] sm:$0xff]
        %v485 = vld [vmem:[#allocation2 + $0x58] sm:$0xff]
        %v486 = vld [vmem:[#allocation2 + $0x60] sm:$0xff]
        %v487 = vld [vmem:[#allocation2 + $0x68] sm:$0xff]
        %v488 = vld [vmem:[#allocation2 + $0x70] sm:$0xff]
        %v489 = vld [vmem:[#allocation2 + $0x78] sm:$0xff]
        %v490 = vld [vmem:[%s424] sm:$0xff]
        %v491 = vld [vmem:[%s424 + $0x8] sm:$0xff]
        %v492 = vld [vmem:[%s424 + $0x10] sm:$0xff]
        %v493 = vld [vmem:[%s424 + $0x18] sm:$0xff]
        %v494 = vld [vmem:[%s424 + $0x20] sm:$0xff]
        %v495 = vld [vmem:[%s424 + $0x28] sm:$0xff]
        %v496 = vld [vmem:[%s424 + $0x30] sm:$0xff]
        %v497 = vld [vmem:[%s424 + $0x38] sm:$0xff]
        %v498 = vld [vmem:[%s424 + $0x40] sm:$0xff]
        %v499 = vld [vmem:[%s424 + $0x48] sm:$0xff]
        %v500 = vld [vmem:[%s424 + $0x50] sm:$0xff]
        %v501 = vld [vmem:[%s424 + $0x58] sm:$0xff]
        %v502 = vld [vmem:[%s424 + $0x60] sm:$0xff]
        %v503 = vld [vmem:[%s424 + $0x68] sm:$0xff]
        %v504 = vld [vmem:[%s424 + $0x70] sm:$0xff]
        %v505 = vld [vmem:[%s424 + $0x78] sm:$0xff]
        %s506 = scalar_lea.vmem [#allocation2], 32
        %v507 = vld [vmem:[%s506] sm:$0xff]
        %v508 = vld [vmem:[%s506 + $0x8] sm:$0xff]
        %v509 = vld [vmem:[%s506 + $0x10] sm:$0xff]
        %v510 = vld [vmem:[%s506 + $0x18] sm:$0xff]
        %v511 = vld [vmem:[%s506 + $0x20] sm:$0xff]
        %v512 = vld [vmem:[%s506 + $0x28] sm:$0xff]
        %v513 = vld [vmem:[%s506 + $0x30] sm:$0xff]
        %v514 = vld [vmem:[%s506 + $0x38] sm:$0xff]
        %v515 = vld [vmem:[%s506 + $0x40] sm:$0xff]
        %v516 = vld [vmem:[%s506 + $0x48] sm:$0xff]
        %v517 = vld [vmem:[%s506 + $0x50] sm:$0xff]
        %v518 = vld [vmem:[%s506 + $0x58] sm:$0xff]
        %v519 = vld [vmem:[%s506 + $0x60] sm:$0xff]
        %v520 = vld [vmem:[%s506 + $0x68] sm:$0xff]
        %v521 = vld [vmem:[%s506 + $0x70] sm:$0xff]
        %v522 = vld [vmem:[%s506 + $0x78] sm:$0xff]
        %v523 = vlaneseq
        %v524 = vshrl.u32 %v523, 7
        %v525 = vsub.s32 0, %v524
        %v526 = vrot.slane %v472, %v525
        %v527 = vmul.f32 %v474, %v526
        %v528 = vmul.f32 %v475, %v526
        %v529 = vmul.f32 %v476, %v526
        %v530 = vmul.f32 %v477, %v526
        %v531 = vmul.f32 %v478, %v526
        %v532 = vmul.f32 %v479, %v526
        %v533 = vmul.f32 %v480, %v526
        %v534 = vmul.f32 %v481, %v526
        %v535 = vmul.f32 %v482, %v526
        %v536 = vmul.f32 %v483, %v526
        %v537 = vmul.f32 %v484, %v526
        %v538 = vmul.f32 %v485, %v526
        %v539 = vmul.f32 %v486, %v526
        %v540 = vmul.f32 %v487, %v526
        %v541 = vmul.f32 %v488, %v526
        %v542 = vmul.f32 %v489, %v526
        %v543 = vlaneseq
        %v544 = vshrl.u32 %v543, 7
        %v545 = vsub.s32 3, %v544
        %v546 = vrot.slane %v472, %v545
        %v547 = vmul.f32 %v490, %v546
        %v548 = vmul.f32 %v491, %v546
        %v549 = vmul.f32 %v492, %v546
        %v550 = vmul.f32 %v493, %v546
        %v551 = vmul.f32 %v494, %v546
        %v552 = vmul.f32 %v495, %v546
        %v553 = vmul.f32 %v496, %v546
        %v554 = vmul.f32 %v497, %v546
        %v555 = vmul.f32 %v498, %v546
        %v556 = vmul.f32 %v499, %v546
        %v557 = vmul.f32 %v500, %v546
        %v558 = vmul.f32 %v501, %v546
        %v559 = vmul.f32 %v502, %v546
        %v560 = vmul.f32 %v503, %v546
        %v561 = vmul.f32 %v504, %v546
        %v562 = vmul.f32 %v505, %v546
        %v563 = vadd.f32 %v527, %v547
        %v564 = vadd.f32 %v528, %v548
        %v565 = vadd.f32 %v529, %v549
        %v566 = vadd.f32 %v530, %v550
        %v567 = vadd.f32 %v531, %v551
        %v568 = vadd.f32 %v532, %v552
        %v569 = vadd.f32 %v533, %v553
        %v570 = vadd.f32 %v534, %v554
        %v571 = vadd.f32 %v535, %v555
        %v572 = vadd.f32 %v536, %v556
        %v573 = vadd.f32 %v537, %v557
        %v574 = vadd.f32 %v538, %v558
        %v575 = vadd.f32 %v539, %v559
        %v576 = vadd.f32 %v540, %v560
        %v577 = vadd.f32 %v541, %v561
        %v578 = vadd.f32 %v542, %v562
        %v579 = vlaneseq
        %v580 = vshrl.u32 %v579, 7
        %v581 = vsub.s32 6, %v580
        %v582 = vrot.slane %v472, %v581
        %v583 = vmul.f32 %v507, %v582
        %v584 = vmul.f32 %v508, %v582
        %v585 = vmul.f32 %v509, %v582
        %v586 = vmul.f32 %v510, %v582
        %v587 = vmul.f32 %v511, %v582
        %v588 = vmul.f32 %v512, %v582
        %v589 = vmul.f32 %v513, %v582
        %v590 = vmul.f32 %v514, %v582
        %v591 = vmul.f32 %v515, %v582
        %v592 = vmul.f32 %v516, %v582
        %v593 = vmul.f32 %v517, %v582
        %v594 = vmul.f32 %v518, %v582
        %v595 = vmul.f32 %v519, %v582
        %v596 = vmul.f32 %v520, %v582
        %v597 = vmul.f32 %v521, %v582
        %v598 = vmul.f32 %v522, %v582
        %v599 = vadd.f32 %v563, %v583
        %v600 = vadd.f32 %v564, %v584
        %v601 = vadd.f32 %v565, %v585
        %v602 = vadd.f32 %v566, %v586
        %v603 = vadd.f32 %v567, %v587
        %v604 = vadd.f32 %v568, %v588
        %v605 = vadd.f32 %v569, %v589
        %v606 = vadd.f32 %v570, %v590
        %v607 = vadd.f32 %v571, %v591
        %v608 = vadd.f32 %v572, %v592
        %v609 = vadd.f32 %v573, %v593
        %v610 = vadd.f32 %v574, %v594
        %v611 = vadd.f32 %v575, %v595
        %v612 = vadd.f32 %v576, %v596
        %v613 = vadd.f32 %v577, %v597
        %v614 = vadd.f32 %v578, %v598
        %v615 = vlaneseq
        %v616 = vshrl.u32 %v615, 7
        %v617 = vsub.s32 1, %v616
        %v618 = vrot.slane %v472, %v617
        %v619 = vmul.f32 %v474, %v618
        %v620 = vmul.f32 %v475, %v618
        %v621 = vmul.f32 %v476, %v618
        %v622 = vmul.f32 %v477, %v618
        %v623 = vmul.f32 %v478, %v618
        %v624 = vmul.f32 %v479, %v618
        %v625 = vmul.f32 %v480, %v618
        %v626 = vmul.f32 %v481, %v618
        %v627 = vmul.f32 %v482, %v618
        %v628 = vmul.f32 %v483, %v618
        %v629 = vmul.f32 %v484, %v618
        %v630 = vmul.f32 %v485, %v618
        %v631 = vmul.f32 %v486, %v618
        %v632 = vmul.f32 %v487, %v618
        %v633 = vmul.f32 %v488, %v618
        %v634 = vmul.f32 %v489, %v618
        %v635 = vlaneseq
        %v636 = vshrl.u32 %v635, 7
        %v637 = vsub.s32 4, %v636
        %v638 = vrot.slane %v472, %v637
        %v639 = vmul.f32 %v490, %v638
        %v640 = vmul.f32 %v491, %v638
        %v641 = vmul.f32 %v492, %v638
        %v642 = vmul.f32 %v493, %v638
        %v643 = vmul.f32 %v494, %v638
        %v644 = vmul.f32 %v495, %v638
        %v645 = vmul.f32 %v496, %v638
        %v646 = vmul.f32 %v497, %v638
        %v647 = vmul.f32 %v498, %v638
        %v648 = vmul.f32 %v499, %v638
        %v649 = vmul.f32 %v500, %v638
        %v650 = vmul.f32 %v501, %v638
        %v651 = vmul.f32 %v502, %v638
        %v652 = vmul.f32 %v503, %v638
        %v653 = vmul.f32 %v504, %v638
        %v654 = vmul.f32 %v505, %v638
        %v655 = vadd.f32 %v619, %v639
        %v656 = vadd.f32 %v620, %v640
        %v657 = vadd.f32 %v621, %v641
        %v658 = vadd.f32 %v622, %v642
        %v659 = vadd.f32 %v623, %v643
        %v660 = vadd.f32 %v624, %v644
        %v661 = vadd.f32 %v625, %v645
        %v662 = vadd.f32 %v626, %v646
        %v663 = vadd.f32 %v627, %v647
        %v664 = vadd.f32 %v628, %v648
        %v665 = vadd.f32 %v629, %v649
        %v666 = vadd.f32 %v630, %v650
        %v667 = vadd.f32 %v631, %v651
        %v668 = vadd.f32 %v632, %v652
        %v669 = vadd.f32 %v633, %v653
        %v670 = vadd.f32 %v634, %v654
        %v671 = vlaneseq
        %v672 = vshrl.u32 %v671, 7
        %v673 = vsub.s32 7, %v672
        %v674 = vrot.slane %v472, %v673
        %v675 = vmul.f32 %v507, %v674
        %v676 = vmul.f32 %v508, %v674
        %v677 = vmul.f32 %v509, %v674
        %v678 = vmul.f32 %v510, %v674
        %v679 = vmul.f32 %v511, %v674
        %v680 = vmul.f32 %v512, %v674
        %v681 = vmul.f32 %v513, %v674
        %v682 = vmul.f32 %v514, %v674
        %v683 = vmul.f32 %v515, %v674
        %v684 = vmul.f32 %v516, %v674
        %v685 = vmul.f32 %v517, %v674
        %v686 = vmul.f32 %v518, %v674
        %v687 = vmul.f32 %v519, %v674
        %v688 = vmul.f32 %v520, %v674
        %v689 = vmul.f32 %v521, %v674
        %v690 = vmul.f32 %v522, %v674
        %v691 = vadd.f32 %v655, %v675
        %v692 = vadd.f32 %v656, %v676
        %v693 = vadd.f32 %v657, %v677
        %v694 = vadd.f32 %v658, %v678
        %v695 = vadd.f32 %v659, %v679
        %v696 = vadd.f32 %v660, %v680
        %v697 = vadd.f32 %v661, %v681
        %v698 = vadd.f32 %v662, %v682
        %v699 = vadd.f32 %v663, %v683
        %v700 = vadd.f32 %v664, %v684
        %v701 = vadd.f32 %v665, %v685
        %v702 = vadd.f32 %v666, %v686
        %v703 = vadd.f32 %v667, %v687
        %v704 = vadd.f32 %v668, %v688
        %v705 = vadd.f32 %v669, %v689
        %v706 = vadd.f32 %v670, %v690
        %v707 = vlaneseq
        %v708 = vshrl.u32 %v707, 7
        %v709 = vsub.s32 2, %v708
        %v710 = vrot.slane %v472, %v709
        %v711 = vmul.f32 %v474, %v710
        %v712 = vmul.f32 %v475, %v710
        %v713 = vmul.f32 %v476, %v710
        %v714 = vmul.f32 %v477, %v710
        %v715 = vmul.f32 %v478, %v710
        %v716 = vmul.f32 %v479, %v710
        %v717 = vmul.f32 %v480, %v710
        %v718 = vmul.f32 %v481, %v710
        %v719 = vmul.f32 %v482, %v710
        %v720 = vmul.f32 %v483, %v710
        %v721 = vmul.f32 %v484, %v710
        %v722 = vmul.f32 %v485, %v710
        %v723 = vmul.f32 %v486, %v710
        %v724 = vmul.f32 %v487, %v710
        %v725 = vmul.f32 %v488, %v710
        %v726 = vmul.f32 %v489, %v710
        %v727 = vlaneseq
        %v728 = vshrl.u32 %v727, 7
        %v729 = vsub.s32 5, %v728
        %v730 = vrot.slane %v472, %v729
        %v731 = vmul.f32 %v490, %v730
        %v732 = vmul.f32 %v491, %v730
        %v733 = vmul.f32 %v492, %v730
        %v734 = vmul.f32 %v493, %v730
        %v735 = vmul.f32 %v494, %v730
        %v736 = vmul.f32 %v495, %v730
        %v737 = vmul.f32 %v496, %v730
        %v738 = vmul.f32 %v497, %v730
        %v739 = vmul.f32 %v498, %v730
        %v740 = vmul.f32 %v499, %v730
        %v741 = vmul.f32 %v500, %v730
        %v742 = vmul.f32 %v501, %v730
        %v743 = vmul.f32 %v502, %v730
        %v744 = vmul.f32 %v503, %v730
        %v745 = vmul.f32 %v504, %v730
        %v746 = vmul.f32 %v505, %v730
        %v747 = vadd.f32 %v711, %v731
        %v748 = vadd.f32 %v712, %v732
        %v749 = vadd.f32 %v713, %v733
        %v750 = vadd.f32 %v714, %v734
        %v751 = vadd.f32 %v715, %v735
        %v752 = vadd.f32 %v716, %v736
        %v753 = vadd.f32 %v717, %v737
        %v754 = vadd.f32 %v718, %v738
        %v755 = vadd.f32 %v719, %v739
        %v756 = vadd.f32 %v720, %v740
        %v757 = vadd.f32 %v721, %v741
        %v758 = vadd.f32 %v722, %v742
        %v759 = vadd.f32 %v723, %v743
        %v760 = vadd.f32 %v724, %v744
        %v761 = vadd.f32 %v725, %v745
        %v762 = vadd.f32 %v726, %v746
        %v763 = vlaneseq
        %v764 = vshrl.u32 %v763, 7
        %v765 = vsub.s32 0, %v764
        %v766 = vrot.slane %v473, %v765
        %v767 = vmul.f32 %v507, %v766
        %v768 = vmul.f32 %v508, %v766
        %v769 = vmul.f32 %v509, %v766
        %v770 = vmul.f32 %v510, %v766
        %v771 = vmul.f32 %v511, %v766
        %v772 = vmul.f32 %v512, %v766
        %v773 = vmul.f32 %v513, %v766
        %v774 = vmul.f32 %v514, %v766
        %v775 = vmul.f32 %v515, %v766
        %v776 = vmul.f32 %v516, %v766
        %v777 = vmul.f32 %v517, %v766
        %v778 = vmul.f32 %v518, %v766
        %v779 = vmul.f32 %v519, %v766
        %v780 = vmul.f32 %v520, %v766
        %v781 = vmul.f32 %v521, %v766
        %v782 = vmul.f32 %v522, %v766
        %v783 = vadd.f32 %v747, %v767
        %v784 = vadd.f32 %v748, %v768
        %v785 = vadd.f32 %v749, %v769
        %v786 = vadd.f32 %v750, %v770
        %v787 = vadd.f32 %v751, %v771
        %v788 = vadd.f32 %v752, %v772
        %v789 = vadd.f32 %v753, %v773
        %v790 = vadd.f32 %v754, %v774
        %v791 = vadd.f32 %v755, %v775
        %v792 = vadd.f32 %v756, %v776
        %v793 = vadd.f32 %v757, %v777
        %v794 = vadd.f32 %v758, %v778
        %v795 = vadd.f32 %v759, %v779
        %v796 = vadd.f32 %v760, %v780
        %v797 = vadd.f32 %v761, %v781
        %v798 = vadd.f32 %v762, %v782
        %v799 = vlaneseq
        %v800 = vshrl.u32 %v799, 7
        %v801 = vadd.s32 %v800, 8
        %vm802 = vcmp.eq.s32.totalorder %v800, 0
        %vm803 = vcmp.eq.s32.totalorder %v801, 0
        %v805 = vrot.slane %v614, 7
        %vm822 = vcmask 1040384
        %v823 = vrot.slane %v599, 7
        %v824 = vrot.slane %v600, 7
        %v825 = vsel %vm822, %v823, %v824
        %v826 = vrot.slane %v601, 7
        %v827 = vsel %vm822, %v824, %v826
        %v828 = vrot.slane %v602, 7
        %v829 = vsel %vm822, %v826, %v828
        %v830 = vrot.slane %v603, 7
        %v831 = vsel %vm822, %v828, %v830
        %v832 = vrot.slane %v604, 7
        %v833 = vsel %vm822, %v830, %v832
        %v834 = vrot.slane %v605, 7
        %v835 = vsel %vm822, %v832, %v834
        %v836 = vrot.slane %v606, 7
        %v837 = vsel %vm822, %v834, %v836
        %v838 = vrot.slane %v607, 7
        %v839 = vsel %vm822, %v836, %v838
        %v840 = vrot.slane %v608, 7
        %v841 = vsel %vm822, %v838, %v840
        %v842 = vrot.slane %v609, 7
        %v843 = vsel %vm822, %v840, %v842
        %v844 = vrot.slane %v610, 7
        %v845 = vsel %vm822, %v842, %v844
        %v846 = vrot.slane %v611, 7
        %v847 = vsel %vm822, %v844, %v846
        %v848 = vrot.slane %v612, 7
        %v849 = vsel %vm822, %v846, %v848
        %v850 = vrot.slane %v613, 7
        %v851 = vsel %vm822, %v848, %v850
        %v852 = vsel %vm822, %v850, %v805
        %v869 = vsel %vm822, %v805, %v823
        %v870 = vsel %vm802, 0.0, %v869
        %v871 = vsel %vm803, 0.0, %v825
        %v872 = vsel %vm802, 0.0, %v827
        %v873 = vsel %vm803, 0.0, %v829
        %v874 = vsel %vm802, 0.0, %v831
        %v875 = vsel %vm803, 0.0, %v833
        %v876 = vsel %vm802, 0.0, %v835
        %v877 = vsel %vm803, 0.0, %v837
        %v878 = vsel %vm802, 0.0, %v839
        %v879 = vsel %vm803, 0.0, %v841
        %v880 = vsel %vm802, 0.0, %v843
        %v881 = vsel %vm803, 0.0, %v845
        %v882 = vsel %vm802, 0.0, %v847
        %v883 = vsel %vm803, 0.0, %v849
        %v884 = vsel %vm802, 0.0, %v851
        %v885 = vsel %vm803, 0.0, %v852
        %vm886 = vcmp.eq.s32.totalorder %v800, 15
        %vm887 = vcmp.eq.s32.totalorder %v801, 15
        %vm904 = vcmask 1046528
        %v905 = vrot.slane %v783, 1
        %v906 = vrot.slane %v784, 1
        %v907 = vsel %vm904, %v905, %v906
        %v908 = vrot.slane %v785, 1
        %v909 = vsel %vm904, %v906, %v908
        %v910 = vrot.slane %v786, 1
        %v911 = vsel %vm904, %v908, %v910
        %v912 = vrot.slane %v787, 1
        %v913 = vsel %vm904, %v910, %v912
        %v914 = vrot.slane %v788, 1
        %v915 = vsel %vm904, %v912, %v914
        %v916 = vrot.slane %v789, 1
        %v917 = vsel %vm904, %v914, %v916
        %v918 = vrot.slane %v790, 1
        %v919 = vsel %vm904, %v916, %v918
        %v920 = vrot.slane %v791, 1
        %v921 = vsel %vm904, %v918, %v920
        %v922 = vrot.slane %v792, 1
        %v923 = vsel %vm904, %v920, %v922
        %v924 = vrot.slane %v793, 1
        %v925 = vsel %vm904, %v922, %v924
        %v926 = vrot.slane %v794, 1
        %v927 = vsel %vm904, %v924, %v926
        %v928 = vrot.slane %v795, 1
        %v929 = vsel %vm904, %v926, %v928
        %v930 = vrot.slane %v796, 1
        %v931 = vsel %vm904, %v928, %v930
        %v932 = vrot.slane %v797, 1
        %v933 = vsel %vm904, %v930, %v932
        %v934 = vrot.slane %v798, 1
        %v935 = vsel %vm904, %v932, %v934
        %v953 = vsel %vm904, %v934, %v905
        %v954 = vsel %vm886, 0.0, %v907
        %v955 = vsel %vm887, 0.0, %v909
        %v956 = vsel %vm886, 0.0, %v911
        %v957 = vsel %vm887, 0.0, %v913
        %v958 = vsel %vm886, 0.0, %v915
        %v959 = vsel %vm887, 0.0, %v917
        %v960 = vsel %vm886, 0.0, %v919
        %v961 = vsel %vm887, 0.0, %v921
        %v962 = vsel %vm886, 0.0, %v923
        %v963 = vsel %vm887, 0.0, %v925
        %v964 = vsel %vm886, 0.0, %v927
        %v965 = vsel %vm887, 0.0, %v929
        %v966 = vsel %vm886, 0.0, %v931
        %v967 = vsel %vm887, 0.0, %v933
        %v968 = vsel %vm886, 0.0, %v935
        %v969 = vsel %vm887, 0.0, %v953
        %v970 = vadd.f32 %v691, %v870
        %v971 = vadd.f32 %v692, %v871
        %v972 = vadd.f32 %v693, %v872
        %v973 = vadd.f32 %v694, %v873
        %v974 = vadd.f32 %v695, %v874
        %v975 = vadd.f32 %v696, %v875
        %v976 = vadd.f32 %v697, %v876
        %v977 = vadd.f32 %v698, %v877
        %v978 = vadd.f32 %v699, %v878
        %v979 = vadd.f32 %v700, %v879
        %v980 = vadd.f32 %v701, %v880
        %v981 = vadd.f32 %v702, %v881
        %v982 = vadd.f32 %v703, %v882
        %v983 = vadd.f32 %v704, %v883
        %v984 = vadd.f32 %v705, %v884
        %v985 = vadd.f32 %v706, %v885
        %v986 = vadd.f32 %v970, %v954
        %v987 = vadd.f32 %v971, %v955
        %v988 = vadd.f32 %v972, %v956
        %v989 = vadd.f32 %v973, %v957
        %v990 = vadd.f32 %v974, %v958
        %v991 = vadd.f32 %v975, %v959
        %v992 = vadd.f32 %v976, %v960
        %v993 = vadd.f32 %v977, %v961
        %v994 = vadd.f32 %v978, %v962
        %v995 = vadd.f32 %v979, %v963
        %v996 = vadd.f32 %v980, %v964
        %v997 = vadd.f32 %v981, %v965
        %v998 = vadd.f32 %v982, %v966
        %v999 = vadd.f32 %v983, %v967
        %v1000 = vadd.f32 %v984, %v968
        %v1001 = vadd.f32 %v985, %v969
        %v1002 = vld [vmem:[%s4] sm:$0xf]
        %v1003 = vld [vmem:[%s5] sm:$0x1]
        %v1005 = vlaneseq
        %v1006 = vshrl.u32 %v1005, 7
        %v1007 = vsub.s32 0, %v1006
        %v1008 = vrot.slane %v1003, %v1007
        %v1011 = vsel %vm425, %v986, 0
        %v1014 = vsel %vm425, %v987, 0
        %v1017 = vsel %vm425, %v988, 0
        %v1020 = vsel %vm425, %v989, 0
        %v1023 = vsel %vm425, %v990, 0
        %v1026 = vsel %vm425, %v991, 0
        %v1029 = vsel %vm425, %v992, 0
        %v1032 = vsel %vm425, %v993, 0
        %v1035 = vsel %vm425, %v994, 0
        %v1038 = vsel %vm425, %v995, 0
        %v1041 = vsel %vm425, %v996, 0
        %v1044 = vsel %vm425, %v997, 0
        %v1047 = vsel %vm425, %v998, 0
        %v1050 = vsel %vm425, %v999, 0
        %v1053 = vsel %vm425, %v1000, 0
        %v1056 = vsel %vm425, %v1001, 0
        %vm1058 = vcmask 1043456
        %v1060 = vsel %vm1058, %v1002, 0
        %1062 = vmatprep.subr.mxu0 0.0
        %1063 = vmatpush1.msra.mxu0 %v1060
        %1064 = vmatprep.subr.mxu0 0.0
        %1065 = vmatpush1.msra.mxu0 0.0
        %1066 = vmatprep.subr.mxu0 0.0
        %1067 = vmatpush1.msra.mxu0 0.0
        %1068 = vmatprep.subr.mxu0 0.0
        %1069 = vmatpush1.msra.mxu0 0.0
        %1070 = vmatprep.subr.mxu0 0.0
        %1071 = vmatpush1.msra.mxu0 0.0
        %1072 = vmatprep.subr.mxu0 0.0
        %1073 = vmatpush1.msra.mxu0 0.0
        %1074 = vmatprep.subr.mxu0 0.0
        %1075 = vmatpush1.msra.mxu0 0.0
        %1076 = vmatprep.subr.mxu0 0.0
        %1077 = vmatpush1.msra.mxu0 0.0
        %1078 = vmatprep.subr.mxu0 0.0
        %1079 = vmatpush1.msra.mxu0 0.0
        %1080 = vmatprep.subr.mxu0 0.0
        %1081 = vmatpush1.msra.mxu0 0.0
        %1082 = vmatprep.subr.mxu0 0.0
        %1083 = vmatpush1.msra.mxu0 0.0
        %1084 = vmatprep.subr.mxu0 0.0
        %1085 = vmatpush1.msra.mxu0 0.0
        %1086 = vmatprep.subr.mxu0 0.0
        %1087 = vmatpush1.msra.mxu0 0.0
        %1088 = vmatprep.subr.mxu0 0.0
        %1089 = vmatpush1.msra.mxu0 0.0
        %1090 = vmatprep.subr.mxu0 0.0
        %1091 = vmatpush1.msra.mxu0 0.0
        %1092 = vmatprep.subr.mxu0 0.0
        %1093 = vmatpush1.msra.mxu0 0.0
        %1094 = vmatprep.subr.mxu0 0.0
        %1095 = vmatpush1.msra.mxu0 0.0
        %1096 = vmatprep.subr.mxu0 0.0
        %1097 = vmatpush1.msra.mxu0 0.0
        %1098 = vmatprep.subr.mxu0 0.0
        %1099 = vmatpush1.msra.mxu0 0.0
        %1100 = vmatprep.subr.mxu0 0.0
        %1101 = vmatpush1.msra.mxu0 0.0
        %1102 = vmatprep.subr.mxu0 0.0
        %1103 = vmatpush1.msra.mxu0 0.0
        %1104 = vmatprep.subr.mxu0 0.0
        %1105 = vmatpush1.msra.mxu0 0.0
        %1106 = vmatprep.subr.mxu0 0.0
        %1107 = vmatpush1.msra.mxu0 0.0
        %1108 = vmatprep.subr.mxu0 0.0
        %1109 = vmatpush1.msra.mxu0 0.0
        %1110 = vmatprep.subr.mxu0 0.0
        %1111 = vmatpush1.msra.mxu0 0.0
        %1112 = vmatprep.subr.mxu0 0.0
        %1113 = vmatpush1.msra.mxu0 0.0
        %1114 = vmatprep.subr.mxu0 0.0
        %1115 = vmatpush1.msra.mxu0 0.0
        %1116 = vmatprep.subr.mxu0 0.0
        %1117 = vmatpush1.msra.mxu0 0.0
        %1118 = vmatprep.subr.mxu0 0.0
        %1119 = vmatpush1.msra.mxu0 0.0
        %1120 = vmatprep.subr.mxu0 0.0
        %1121 = vmatpush1.msra.mxu0 0.0
        %1122 = vmatprep.subr.mxu0 0.0
        %1123 = vmatpush1.msra.mxu0 0.0
        %1124 = vmatprep.subr.mxu0 0.0
        %1125 = vmatpush1.msra.mxu0 0.0
        %1126 = vmatprep.mubr.f32.mxu0 0.0
        %1127 = vmatmul.mubr.f32.gmra.mrb[0].mxu0 %v1011
        %v1128 = vpop.f32.mrb[0].mxu0
        %v1129 = vadd.f32 %v1008, %v1128
        %v1130 = vpop.f32.mrb[0].mxu0
        %1131 = vmatprep.mubr.f32.mxu0 0.0
        %1132 = vmatmul.mubr.f32.gmra.mrb[0].mxu0 %v1014
        %v1133 = vpop.f32.mrb[0].mxu0
        %v1134 = vadd.f32 %v1008, %v1133
        %v1135 = vpop.f32.mrb[0].mxu0
        %1136 = vmatprep.mubr.f32.mxu0 0.0
        %1137 = vmatmul.mubr.f32.gmra.mrb[0].mxu0 %v1017
        %v1138 = vpop.f32.mrb[0].mxu0
        %v1139 = vadd.f32 %v1008, %v1138
        %v1140 = vpop.f32.mrb[0].mxu0
        %1141 = vmatprep.mubr.f32.mxu0 0.0
        %1142 = vmatmul.mubr.f32.gmra.mrb[0].mxu0 %v1020
        %v1143 = vpop.f32.mrb[0].mxu0
        %v1144 = vadd.f32 %v1008, %v1143
        %v1145 = vpop.f32.mrb[0].mxu0
        %1146 = vmatprep.mubr.f32.mxu0 0.0
        %1147 = vmatmul.mubr.f32.gmra.mrb[0].mxu0 %v1023
        %v1148 = vpop.f32.mrb[0].mxu0
        %v1149 = vadd.f32 %v1008, %v1148
        %v1150 = vpop.f32.mrb[0].mxu0
        %1151 = vmatprep.mubr.f32.mxu0 0.0
        %1152 = vmatmul.mubr.f32.gmra.mrb[0].mxu0 %v1026
        %v1153 = vpop.f32.mrb[0].mxu0
        %v1154 = vadd.f32 %v1008, %v1153
        %v1155 = vpop.f32.mrb[0].mxu0
        %1156 = vmatprep.mubr.f32.mxu0 0.0
        %1157 = vmatmul.mubr.f32.gmra.mrb[0].mxu0 %v1029
        %v1158 = vpop.f32.mrb[0].mxu0
        %v1159 = vadd.f32 %v1008, %v1158
        %v1160 = vpop.f32.mrb[0].mxu0
        %1161 = vmatprep.mubr.f32.mxu0 0.0
        %1162 = vmatmul.mubr.f32.gmra.mrb[0].mxu0 %v1032
        %v1163 = vpop.f32.mrb[0].mxu0
        %v1164 = vadd.f32 %v1008, %v1163
        %v1165 = vpop.f32.mrb[0].mxu0
        %1166 = vmatprep.mubr.f32.mxu0 0.0
        %1167 = vmatmul.mubr.f32.gmra.mrb[0].mxu0 %v1035
        %v1168 = vpop.f32.mrb[0].mxu0
        %v1169 = vadd.f32 %v1008, %v1168
        %v1170 = vpop.f32.mrb[0].mxu0
        %1171 = vmatprep.mubr.f32.mxu0 0.0
        %1172 = vmatmul.mubr.f32.gmra.mrb[0].mxu0 %v1038
        %v1173 = vpop.f32.mrb[0].mxu0
        %v1174 = vadd.f32 %v1008, %v1173
        %v1175 = vpop.f32.mrb[0].mxu0
        %1176 = vmatprep.mubr.f32.mxu0 0.0
        %1177 = vmatmul.mubr.f32.gmra.mrb[0].mxu0 %v1041
        %v1178 = vpop.f32.mrb[0].mxu0
        %v1179 = vadd.f32 %v1008, %v1178
        %v1180 = vpop.f32.mrb[0].mxu0
        %1181 = vmatprep.mubr.f32.mxu0 0.0
        %1182 = vmatmul.mubr.f32.gmra.mrb[0].mxu0 %v1044
        %v1183 = vpop.f32.mrb[0].mxu0
        %v1184 = vadd.f32 %v1008, %v1183
        %v1185 = vpop.f32.mrb[0].mxu0
        %1186 = vmatprep.mubr.f32.mxu0 0.0
        %1187 = vmatmul.mubr.f32.gmra.mrb[0].mxu0 %v1047
        %v1188 = vpop.f32.mrb[0].mxu0
        %v1189 = vadd.f32 %v1008, %v1188
        %v1190 = vpop.f32.mrb[0].mxu0
        %1191 = vmatprep.mubr.f32.mxu0 0.0
        %1192 = vmatmul.mubr.f32.gmra.mrb[0].mxu0 %v1050
        %v1193 = vpop.f32.mrb[0].mxu0
        %v1194 = vadd.f32 %v1008, %v1193
        %v1195 = vpop.f32.mrb[0].mxu0
        %1196 = vmatprep.mubr.f32.mxu0 0.0
        %1197 = vmatmul.mubr.f32.gmra.mrb[0].mxu0 %v1053
        %v1198 = vpop.f32.mrb[0].mxu0
        %v1199 = vadd.f32 %v1008, %v1198
        %v1200 = vpop.f32.mrb[0].mxu0
        %1201 = vmatprep.mubr.f32.mxu0 0.0
        %1202 = vmatmul.mubr.f32.gmra.mrb[0].mxu0 %v1056
        %v1203 = vpop.f32.mrb[0].mxu0
        %v1204 = vadd.f32 %v1008, %v1203
        %v1205 = vpop.f32.mrb[0].mxu0
        %1206 = vdwg.mxu0
        %1207 = vst [vmem:[%s361] sm:$0xff] %v1129
        %1208 = vst [vmem:[%s361 + $0x8] sm:$0xff] %v1134
        %1209 = vst [vmem:[%s361 + $0x10] sm:$0xff] %v1139
        %1210 = vst [vmem:[%s361 + $0x18] sm:$0xff] %v1144
        %1211 = vst [vmem:[%s361 + $0x20] sm:$0xff] %v1149
        %1212 = vst [vmem:[%s361 + $0x28] sm:$0xff] %v1154
        %1213 = vst [vmem:[%s361 + $0x30] sm:$0xff] %v1159
        %1214 = vst [vmem:[%s361 + $0x38] sm:$0xff] %v1164
        %1215 = vst [vmem:[%s361 + $0x40] sm:$0xff] %v1169
        %1216 = vst [vmem:[%s361 + $0x48] sm:$0xff] %v1174
        %1217 = vst [vmem:[%s361 + $0x50] sm:$0xff] %v1179
        %1218 = vst [vmem:[%s361 + $0x58] sm:$0xff] %v1184
        %1219 = vst [vmem:[%s361 + $0x60] sm:$0xff] %v1189
        %1220 = vst [vmem:[%s361 + $0x68] sm:$0xff] %v1194
        %1221 = vst [vmem:[%s361 + $0x70] sm:$0xff] %v1199
        %1222 = vst [vmem:[%s361 + $0x78] sm:$0xff] %v1204
        %s1223 = sand.u32 %s205, 1
        %s1224 = scalar_lea.sflag [#allocation4], %s1223
        %s1225 = sand.u32 %s205, 1
        %s1226 = smul.addr %s1225, 128
        %s1227 = scalar_lea.vmem [#allocation3], %s1226
        // Predicated region
        $region61: #{tpu_custom_call.1} parent=43 // pred_check
          %p1228 = pneg %p215
        $region62: #{tpu_custom_call.1} parent=43 // pred_check_branch
          %1230 = sbr.rel (%p1228) target = $region64
        $region63: #{tpu_custom_call.1} parent=43 // pred_region
          %s1231 = smul.u32 8, %s25
          %s1233 = ssub.s32 2048, 2048
          %1234 = vsyncadd %s1224, %s1233
          %s1235 = smul.addr %s1231, 2
          %s1236 = smul.addr %s24, 32
          %s1237 = sadd.s32 %s1235, %s1236
          %s1238 = smul.addr %s1237, 128
          %s1239 = scalar_lea.hbm %s6, %s1238
          %s1240 = sshll.u32 %s1227, 4
          %s1241 = int_to_ptr.vmem [resolvable:$true] %s1240
          %1246 = dma.vmem_to_hbm [thread:$0]  %s1241, 2048, %s1239, %s1224, 128, 128, 8
        $region64: #{tpu_custom_call.1} parent=43 // pred_fallthru
          _
      $region44: #{tpu_custom_call.1} parent=5 // pred_fallthru
        _
      %p1247 = scmp.le.s32.totalorder 2, %s15
      // Predicated region
      $region65: #{tpu_custom_call.1} parent=5 // pred_check
        %p1248 = pneg %p1247
      $region66: #{tpu_custom_call.1} parent=5 // pred_check_branch
        %1250 = sbr.rel (%p1248) target = $region68
      $region67: #{tpu_custom_call.1} parent=5 // pred_region
        %s1251 = ssub.s32 %s15, 2
        // Predicated region
        $region69: #{tpu_custom_call.1} parent=67 // pred_check
          %p1252 = pneg %p221
        $region70: #{tpu_custom_call.1} parent=67 // pred_check_branch
          %1254 = sbr.rel (%p1252) target = $region72
        $region71: #{tpu_custom_call.1} parent=67 // pred_region
          %s1255 = sand.u32 %s206, 1
          %s1256 = scalar_lea.sflag [#allocation4], %s1255
          %s1257 = sand.u32 %s206, 1
          %s1258 = smul.addr %s1257, 128
          %s1259 = scalar_lea.vmem [#allocation3], %s1258
          %1260 = dma.done %s1256, 2048
        $region72: #{tpu_custom_call.1} parent=67 // pred_fallthru
          _
      $region68: #{tpu_custom_call.1} parent=5 // pred_fallthru
        _
    $region6: #{tpu_custom_call.1} parent=1 // loop_footer
      %s19 = sadd.s32 1, %s15
    $region7: #{tpu_custom_call.1} parent=1 // loop_footer_branch
      %14 = sbr.rel target = $region3
    $region8: #{tpu_custom_call.1} parent=1 // loop_exit
      _
    %1261 = vsyncpa [#allocation4], 1
    %s1262 = scalar_lea.sflag [#allocation4], 1
    %1263 = vsyncpa %s1262, 1

</llo_original>
